<compile_context>
chip_gen: v6e
topology: v6e:2x2x1
jax: 0.10.0
libtpu: 0.0.40
codegen_flags: <defaults>
</compile_context>

<pallas_src>
import functools

import jax
import jax.numpy as jnp
from jax.experimental import pallas as pl
from jax.experimental.pallas import tpu as pltpu

_LOG2E = 1.4426950408889634


def cross_attention_flash_kernel(q_ref, k_ref, v_ref, *rest,
                                 approx_recip, fuse_proj, exp_dtype):
    if fuse_proj:
        wp_ref, bp_ref, out_ref, m_scr, l_scr, acc_scr = rest
    else:
        out_ref, m_scr, l_scr, acc_scr = rest

    ki = pl.program_id(2)
    nk = pl.num_programs(2)

    @pl.when(ki == 0)
    def _init():
        m_scr[...] = jnp.full(m_scr.shape, -jnp.inf, dtype=m_scr.dtype)
        l_scr[...] = jnp.zeros_like(l_scr)
        acc_scr[...] = jnp.zeros_like(acc_scr)

    q = q_ref[0]                       # (2H, TQ, hd); scale*log2(e) pre-folded
    k = k_ref[0]                       # (2H, TK, hd)
    v = v_ref[0]                       # (2H, TK, hd)

    # Head-batched scores, contracting the trailing hd axis (no k.T).
    s = jnp.einsum('hqd,hkd->hqk', q, k,
                   preferred_element_type=jnp.float32)   # (2H, TQ, TK), log2-scaled

    # Flash-style online softmax in base 2 (exp2 trick), f32 running stats.
    m_prev = m_scr[...]
    m_new = jnp.maximum(m_prev, s.max(axis=-1, keepdims=True))
    alpha = jnp.exp2(m_prev - m_new)
    p = jnp.exp2((s - m_new).astype(exp_dtype))
    l_scr[...] = alpha * l_scr[...] + jnp.sum(
        p.astype(jnp.float32), axis=-1, keepdims=True)
    acc_scr[...] = alpha * acc_scr[...] + jnp.einsum(
        'hqk,hkd->hqd', p.astype(v.dtype), v, preferred_element_type=jnp.float32)
    m_scr[...] = m_new

    @pl.when(ki == nk - 1)
    def _finalize():
        # Per-row reciprocal applied once to the accumulator (EUP).
        inv_l = pl.reciprocal(l_scr[...], approx=approx_recip)
        o = acc_scr[...] * inv_l                          # (2H, TQ, hd), f32
        # (2H, TQ, hd) -> (TQ, 2C) == torch.cat([x12, x21], dim=-1) layout.
        # Runs once per (batch, q-tile), not per KV step.
        fused = jnp.concatenate([o[h] for h in range(o.shape[0])], axis=-1)
        if fuse_proj:
            res = jnp.dot(fused.astype(wp_ref.dtype), wp_ref[...],
                          preferred_element_type=jnp.float32) + bp_ref[...]
            out_ref[0] = res.astype(out_ref.dtype)
        else:
            out_ref[0] = fused.astype(out_ref.dtype)


def _choose_tile(n, target):
    if n <= target:
        return n
    if n % 8 != 0:
        return n        # fall back to one full-length tile (e.g. ViT N=197)
    t = max(8, (target // 8) * 8)
    while n % t:
        t -= 8
    return t


def _device_kind():
    try:
        return jax.devices()[0].device_kind.lower()
    except Exception:
        return ""


def cross_attention_fusion(x1, x2, w_qkv1, w_qkv2, w_proj, b_proj, *,
                           num_heads, compute_dtype=jnp.bfloat16,
                           approx_recip=True, exp_dtype=None,
                           q_tile=256, kv_tile=None, fuse_proj=None,
                           out_dtype=None, vmem_limit_bytes=None):
    """Pallas forward of CrossAttentionFusion (eval, swap_k=False, qk_norm off)."""
    B, N, C = x1.shape
    assert x2.shape == (B, N, C)
    H = num_heads
    assert C % H == 0, "dim//2 must be divisible by num_heads"
    hd = C // H
    dim = 2 * C
    scale = hd ** -0.5
    cdt = compute_dtype
    if out_dtype is None:
        out_dtype = x1.dtype

    # --- generation-aware defaults -----------------------------------------
    kind = _device_kind()
    big_vmem = any(t in kind for t in ("v4", "v5", "v6"))   # 128 MiB VMEM parts
    is_v5e = ("v5 lite" in kind) or ("v5lite" in kind) or ("v5e" in kind)
    is_v7 = "v7" in kind
    if vmem_limit_bytes is None:
        vmem_limit_bytes = (96 if big_vmem else 48) * 1024 * 1024
    if kv_tile is None:
        kv_tile = 1024 if big_vmem else 512
    if fuse_proj is None:
        # On v7x (64 MiB VMEM) a large resident W_proj is better spent on KV
        # buffering; keep the fusion elsewhere (avoids an HBM round trip).
        fuse_proj = not (is_v7 and dim >= 1024)
    if exp_dtype is None:
        use_bf16_exp = (jnp.dtype(cdt) == jnp.dtype(jnp.bfloat16)) and not is_v5e
        exp_dtype = jnp.bfloat16 if use_bf16_exp else jnp.float32

    # --- tiling -------------------------------------------------------------
    q_target = q_tile
    if B == 1 and N > 8 and N % 16 == 0:
        q_target = min(q_target, N // 2)   # keep both v7x TensorCores busy
    tq = _choose_tile(N, q_target)
    tk = _choose_tile(N, kv_tile)
    nq, nk = N // tq, N // tk

    # --- Q/K/V projections hoisted out of the kernel (one pass, full GEMMs) --
    x1c = x1.astype(cdt)
    x2c = x2.astype(cdt)

    def heads(y):                          # (B, N, C) -> (B, H, N, hd)
        return y.reshape(B, N, H, hd).transpose(0, 2, 1, 3)

    def project(x, w_qkv, q_fold):
        # nn.Linear layout (out, in); pre-transpose, fold scale*log2e into Wq.
        wq = (w_qkv[:C].T * q_fold).astype(cdt)
        wk = w_qkv[C:2 * C].T.astype(cdt)
        wv = w_qkv[2 * C:].T.astype(cdt)
        q = jnp.dot(x, wq, preferred_element_type=jnp.float32).astype(cdt)
        k = jnp.dot(x, wk, preferred_element_type=jnp.float32).astype(cdt)
        v = jnp.dot(x, wv, preferred_element_type=jnp.float32).astype(cdt)
        return heads(q), heads(k), heads(v)

    q_fold = scale * _LOG2E
    q1, k1, v1 = project(x1c, w_qkv1, q_fold)
    q2, k2, v2 = project(x2c, w_qkv2, q_fold)

    # swap_k=False: direction 1->2 attends over x2's K/V, 2->1 over x1's.
    q_all = jnp.concatenate([q1, q2], axis=1)    # (B, 2H, N, hd)
    k_all = jnp.concatenate([k2, k1], axis=1)
    v_all = jnp.concatenate([v2, v1], axis=1)

    wp = w_proj.T.astype(cdt)                    # (2C, dim), (in, out)
    bp = b_proj.reshape(1, dim).astype(jnp.float32)

    kernel = functools.partial(cross_attention_flash_kernel,
                               approx_recip=approx_recip, fuse_proj=fuse_proj,
                               exp_dtype=exp_dtype)

    q_idx = lambda b, qi, ki: (b, 0, qi, 0)
    kv_idx = lambda b, qi, ki: (b, 0, ki, 0)
    o_idx = lambda b, qi, ki: (b, qi, 0)
    w_idx = lambda b, qi, ki: (0, 0)

    in_specs = [
        pl.BlockSpec((1, 2 * H, tq, hd), q_idx),     # Q (both directions)
        pl.BlockSpec((1, 2 * H, tk, hd), kv_idx),    # K (cross)
        pl.BlockSpec((1, 2 * H, tk, hd), kv_idx),    # V (cross)
    ]
    inputs = [q_all, k_all, v_all]
    if fuse_proj:
        in_specs += [pl.BlockSpec((dim, dim), w_idx),    # W_proj^T
                     pl.BlockSpec((1, dim), w_idx)]      # b_proj
        inputs += [wp, bp]

    kernel_out_dtype = out_dtype if fuse_proj else cdt

    out = pl.pallas_call(
        kernel,
        out_shape=jax.ShapeDtypeStruct((B, N, dim), kernel_out_dtype),
        grid_spec=pltpu.PrefetchScalarGridSpec(
            num_scalar_prefetch=0,
            grid=(B, nq, nk),
            in_specs=in_specs,
            out_specs=pl.BlockSpec((1, tq, dim), o_idx),
            scratch_shapes=[
                pltpu.VMEM((2 * H, tq, 1), jnp.float32),   # running max (log2)
                pltpu.VMEM((2 * H, tq, 1), jnp.float32),   # running sum
                pltpu.VMEM((2 * H, tq, hd), jnp.float32),  # output accumulator
            ]),
        compiler_params=pltpu.CompilerParams(
            dimension_semantics=("parallel", "parallel", "arbitrary"),
            vmem_limit_bytes=vmem_limit_bytes),
    )(*inputs)

    if not fuse_proj:
        out = (jnp.dot(out, wp, preferred_element_type=jnp.float32)
               + bp).astype(out_dtype)
    return out


def reference_forward(x1, x2, w_qkv1, w_qkv2, w_proj, b_proj, *, num_heads):
    """Pure-JAX replica of the PyTorch forward (eval mode) for verification."""
    B, N, C = x1.shape
    hd = C // num_heads
    scale = hd ** -0.5

    def qkv(x, w):
        out = (x @ w.T).reshape(B, N, 3, num_heads, hd).transpose(2, 0, 3, 1, 4)
        return out[0], out[1], out[2]          # each (B, H, N, hd)

    q1, k1, v1 = qkv(x1, w_qkv1)
    q2, k2, v2 = qkv(x2, w_qkv2)

    def attn(q, k, v):
        s = (q * scale) @ jnp.swapaxes(k, -2, -1)
        p = jax.nn.softmax(s, axis=-1)
        return p @ v

    x12 = attn(q1, k2, v2).transpose(0, 2, 1, 3).reshape(B, N, C)
    x21 = attn(q2, k1, v1).transpose(0, 2, 1, 3).reshape(B, N, C)
    return jnp.concatenate([x12, x21], axis=-1) @ w_proj.T + b_proj


if __name__ == "__main__":
    # dim=64, num_heads=2 -> head_dim = dim//2//num_heads = 16,
    # inputs x1, x2 of shape (B, N, dim//2) = (2, 8, 32).
    dim = 64
    num_heads = 2
    B, N = 2, 8
    C = dim // 2

    key = jax.random.PRNGKey(0)
    k1, k2, k3, k4, k5, k6 = jax.random.split(key, 6)

    x1 = jax.random.normal(k1, (B, N, C), dtype=jnp.float32)
    x2 = jax.random.normal(k2, (B, N, C), dtype=jnp.float32)

    # nn.Linear weight layout: (out_features, in_features).
    w_qkv1 = jax.random.normal(k3, (3 * C, C), dtype=jnp.float32) * 0.05
    w_qkv2 = jax.random.normal(k4, (3 * C, C), dtype=jnp.float32) * 0.05
    w_proj = jax.random.normal(k5, (dim, dim), dtype=jnp.float32) * 0.05
    b_proj = jax.random.normal(k6, (dim,), dtype=jnp.float32) * 0.05

    ref = reference_forward(x1, x2, w_qkv1, w_qkv2, w_proj, b_proj,
                            num_heads=num_heads)

    # Fidelity check: f32 compute, exact reciprocal, fused projection.
    out_f32 = cross_attention_fusion(x1, x2, w_qkv1, w_qkv2, w_proj, b_proj,
                                     num_heads=num_heads,
                                     compute_dtype=jnp.float32,
                                     approx_recip=False, fuse_proj=True)
    out_f32 = jax.block_until_ready(out_f32)
    assert out_f32.shape == (B, N, dim)
    assert jnp.allclose(out_f32, ref, rtol=1e-4, atol=1e-4), "f32 mismatch"

    # Fast path: bf16 MXU matmuls with f32 accumulation, fused projection.
    out_bf16 = cross_attention_fusion(x1, x2, w_qkv1, w_qkv2, w_proj, b_proj,
                                      num_heads=num_heads, fuse_proj=True)
    out_bf16 = jax.block_until_ready(out_bf16)
    assert out_bf16.shape == (B, N, dim)
    assert jnp.allclose(out_bf16, ref, rtol=3e-2, atol=3e-2), "bf16 mismatch"

    # Un-fused output-projection path (the v7x / large-dim option).
    out_unf = cross_attention_fusion(x1, x2, w_qkv1, w_qkv2, w_proj, b_proj,
                                     num_heads=num_heads, fuse_proj=False)
    out_unf = jax.block_until_ready(out_unf)
    assert out_unf.shape == (B, N, dim)
    assert jnp.allclose(out_unf, ref, rtol=3e-2, atol=3e-2), "unfused mismatch"

    print("KERNEL_OK")
</pallas_src>

<mosaic_0001>
module attributes {stable_mosaic.version = 11 : i64} {
  func.func @cross_attention_flash_kernel(%arg0: i32, %arg1: i32, %arg2: i32, %arg3: memref<1x4x8x16xf32, #tpu.memory_space<vmem>>, %arg4: memref<1x4x8x16xf32, #tpu.memory_space<vmem>>, %arg5: memref<1x4x8x16xf32, #tpu.memory_space<vmem>>, %arg6: memref<64x64xf32, #tpu.memory_space<vmem>>, %arg7: memref<1x64xf32, #tpu.memory_space<vmem>>, %arg8: memref<1x8x64xf32, #tpu.memory_space<vmem>>, %arg9: memref<4x8x1xf32, #tpu.memory_space<vmem>>, %arg10: memref<4x8x1xf32, #tpu.memory_space<vmem>>, %arg11: memref<4x8x16xf32, #tpu.memory_space<vmem>>) attributes {dimension_semantics = [#tpu.dimension_semantics<parallel>, #tpu.dimension_semantics<parallel>, #tpu.dimension_semantics<arbitrary>], iteration_bounds = array<i64: 2, 1, 1>, scalar_prefetch = 0 : i64, scratch_operands = 3 : i64, tpu.core_type = #tpu.core_type<tc>, window_params = [{transform_indices = @transform_0, window_bounds = array<i64: 1, 4, 8, 16>}, {transform_indices = @transform_1, window_bounds = array<i64: 1, 4, 8, 16>}, {transform_indices = @transform_2, window_bounds = array<i64: 1, 4, 8, 16>}, {pipeline_mode = #tpu.pipeline_mode<synchronous>, transform_indices = @transform_3, window_bounds = array<i64: 64, 64>}, {pipeline_mode = #tpu.pipeline_mode<synchronous>, transform_indices = @transform_4, window_bounds = array<i64: 1, 64>}, {transform_indices = @transform_5, window_bounds = array<i64: 1, 8, 64>}]} {
    %c0_i32 = arith.constant 0 : i32
    %0 = arith.cmpi eq, %arg2, %c0_i32 : i32
    %1 = arith.extui %0 : i1 to i32
    %c0_i32_0 = arith.constant 0 : i32
    %2 = arith.cmpi ne, %1, %c0_i32_0 : i32
    scf.if %2 {
      %cst_35 = arith.constant 0xFF800000 : f32
      %35 = vector.broadcast %cst_35 : f32 to vector<4x8x1xf32>
      %c0_36 = arith.constant 0 : index
      %c0_37 = arith.constant 0 : index
      %c0_38 = arith.constant 0 : index
      %36 = vector.load %arg9[%c0_36, %c0_37, %c0_38] : memref<4x8x1xf32, #tpu.memory_space<vmem>>, vector<4x8x1xf32>
      tpu.vector_store %arg9[%c0_36, %c0_37, %c0_38], %35 {strides = array<i32>} : memref<4x8x1xf32, #tpu.memory_space<vmem>>, vector<4x8x1xf32>,
      %cst_39 = arith.constant 0.000000e+00 : f32
      %37 = vector.broadcast %cst_39 : f32 to vector<4x8x1xf32>
      %c0_40 = arith.constant 0 : index
      %c0_41 = arith.constant 0 : index
      %c0_42 = arith.constant 0 : index
      %38 = vector.load %arg10[%c0_40, %c0_41, %c0_42] : memref<4x8x1xf32, #tpu.memory_space<vmem>>, vector<4x8x1xf32>
      tpu.vector_store %arg10[%c0_40, %c0_41, %c0_42], %37 {strides = array<i32>} : memref<4x8x1xf32, #tpu.memory_space<vmem>>, vector<4x8x1xf32>,
      %cst_43 = arith.constant 0.000000e+00 : f32
      %39 = vector.broadcast %cst_43 : f32 to vector<4x8x16xf32>
      %c0_44 = arith.constant 0 : index
      %c0_45 = arith.constant 0 : index
      %c0_46 = arith.constant 0 : index
      %40 = vector.load %arg11[%c0_44, %c0_45, %c0_46] : memref<4x8x16xf32, #tpu.memory_space<vmem>>, vector<4x8x16xf32>
      tpu.vector_store %arg11[%c0_44, %c0_45, %c0_46], %39 {strides = array<i32>} : memref<4x8x16xf32, #tpu.memory_space<vmem>>, vector<4x8x16xf32>,
    } else {
    }
    %c0 = arith.constant 0 : index
    %c0_1 = arith.constant 0 : index
    %c0_2 = arith.constant 0 : index
    %c0_3 = arith.constant 0 : index
    %3 = vector.load %arg3[%c0, %c0_1, %c0_2, %c0_3] : memref<1x4x8x16xf32, #tpu.memory_space<vmem>>, vector<1x4x8x16xf32>
    %4 = vector.shape_cast %3 : vector<1x4x8x16xf32> to vector<4x8x16xf32>
    %c0_4 = arith.constant 0 : index
    %c0_5 = arith.constant 0 : index
    %c0_6 = arith.constant 0 : index
    %c0_7 = arith.constant 0 : index
    %5 = vector.load %arg4[%c0_4, %c0_5, %c0_6, %c0_7] : memref<1x4x8x16xf32, #tpu.memory_space<vmem>>, vector<1x4x8x16xf32>
    %6 = vector.shape_cast %5 : vector<1x4x8x16xf32> to vector<4x8x16xf32>
    %c0_8 = arith.constant 0 : index
    %c0_9 = arith.constant 0 : index
    %c0_10 = arith.constant 0 : index
    %c0_11 = arith.constant 0 : index
    %7 = vector.load %arg5[%c0_8, %c0_9, %c0_10, %c0_11] : memref<1x4x8x16xf32, #tpu.memory_space<vmem>>, vector<1x4x8x16xf32>
    %8 = vector.shape_cast %7 : vector<1x4x8x16xf32> to vector<4x8x16xf32>
    "tpu.trace_start"() <{level = 10 : i32, message = "hqd,hkd->hqk"}> : () -> ()
    %cst = arith.constant dense<0.000000e+00> : vector<4x8x8xf32>
    %9 = tpu.matmul %4, %6, %cst {dimension_numbers = #tpu.dot_dimension_numbers<[2], [2], [1], [1], [0, 0, 0, 1, 1, 1], [0], [0]>} : vector<4x8x16xf32>, vector<4x8x16xf32>, vector<4x8x8xf32> -> vector<4x8x8xf32>
    "tpu.trace_stop"() : () -> ()
    %c0_12 = arith.constant 0 : index
    %c0_13 = arith.constant 0 : index
    %c0_14 = arith.constant 0 : index
    %10 = vector.load %arg9[%c0_12, %c0_13, %c0_14] : memref<4x8x1xf32, #tpu.memory_space<vmem>>, vector<4x8x1xf32>
    %cst_15 = arith.constant dense<0xFF800000> : vector<4x8xf32>
    %11 = vector.multi_reduction <maximumf>, %9, %cst_15 [2] : vector<4x8x8xf32> to vector<4x8xf32>
    %12 = vector.shape_cast %11 : vector<4x8xf32> to vector<4x8x1xf32>
    %13 = arith.maximumf %10, %12 : vector<4x8x1xf32>
    %14 = arith.subf %10, %13 : vector<4x8x1xf32>
    %15 = math.exp2 %14 : vector<4x8x1xf32>
    %16 = vector.broadcast %13 : vector<4x8x1xf32> to vector<4x8x8xf32>
    %17 = arith.subf %9, %16 : vector<4x8x8xf32>
    %18 = math.exp2 %17 : vector<4x8x8xf32>
    %c0_16 = arith.constant 0 : index
    %c0_17 = arith.constant 0 : index
    %c0_18 = arith.constant 0 : index
    %19 = vector.load %arg10[%c0_16, %c0_17, %c0_18] : memref<4x8x1xf32, #tpu.memory_space<vmem>>, vector<4x8x1xf32>
    %20 = arith.mulf %15, %19 : vector<4x8x1xf32>
    %cst_19 = arith.constant dense<0.000000e+00> : vector<4x8xf32>
    %21 = vector.multi_reduction <add>, %18, %cst_19 [2] : vector<4x8x8xf32> to vector<4x8xf32>
    %22 = vector.shape_cast %21 : vector<4x8xf32> to vector<4x8x1xf32>
    %23 = arith.addf %20, %22 : vector<4x8x1xf32>
    %c0_20 = arith.constant 0 : index
    %c0_21 = arith.constant 0 : index
    %c0_22 = arith.constant 0 : index
    %24 = vector.load %arg10[%c0_20, %c0_21, %c0_22] : memref<4x8x1xf32, #tpu.memory_space<vmem>>, vector<4x8x1xf32>
    tpu.vector_store %arg10[%c0_20, %c0_21, %c0_22], %23 {strides = array<i32>} : memref<4x8x1xf32, #tpu.memory_space<vmem>>, vector<4x8x1xf32>,
    %c0_23 = arith.constant 0 : index
    %c0_24 = arith.constant 0 : index
    %c0_25 = arith.constant 0 : index
    %25 = vector.load %arg11[%c0_23, %c0_24, %c0_25] : memref<4x8x16xf32, #tpu.memory_space<vmem>>, vector<4x8x16xf32>
    %26 = vector.broadcast %15 : vector<4x8x1xf32> to vector<4x8x16xf32>
    %27 = arith.mulf %26, %25 : vector<4x8x16xf32>
    "tpu.trace_start"() <{level = 10 : i32, message = "hqk,hkd->hqd"}> : () -> ()
    %cst_26 = arith.constant dense<0.000000e+00> : vector<4x8x16xf32>
    %28 = tpu.matmul %18, %8, %cst_26 {dimension_numbers = #tpu.dot_dimension_numbers<[2], [1], [1], [2], [0, 0, 0, 1, 1, 2], [0], [0]>} : vector<4x8x8xf32>, vector<4x8x16xf32>, vector<4x8x16xf32> -> vector<4x8x16xf32>
    "tpu.trace_stop"() : () -> ()
    %29 = arith.addf %27, %28 : vector<4x8x16xf32>
    %c0_27 = arith.constant 0 : index
    %c0_28 = arith.constant 0 : index
    %c0_29 = arith.constant 0 : index
    %30 = vector.load %arg11[%c0_27, %c0_28, %c0_29] : memref<4x8x16xf32, #tpu.memory_space<vmem>>, vector<4x8x16xf32>
    tpu.vector_store %arg11[%c0_27, %c0_28, %c0_29], %29 {strides = array<i32>} : memref<4x8x16xf32, #tpu.memory_space<vmem>>, vector<4x8x16xf32>,
    %c0_30 = arith.constant 0 : index
    %c0_31 = arith.constant 0 : index
    %c0_32 = arith.constant 0 : index
    %31 = vector.load %arg9[%c0_30, %c0_31, %c0_32] : memref<4x8x1xf32, #tpu.memory_space<vmem>>, vector<4x8x1xf32>
    tpu.vector_store %arg9[%c0_30, %c0_31, %c0_32], %13 {strides = array<i32>} : memref<4x8x1xf32, #tpu.memory_space<vmem>>, vector<4x8x1xf32>,
    %c0_i32_33 = arith.constant 0 : i32
    %32 = arith.cmpi eq, %arg2, %c0_i32_33 : i32
    %33 = arith.extui %32 : i1 to i32
    %c0_i32_34 = arith.constant 0 : i32
    %34 = arith.cmpi ne, %33, %c0_i32_34 : i32
    scf.if %34 {
      %c0_35 = arith.constant 0 : index
      %c0_36 = arith.constant 0 : index
      %c0_37 = arith.constant 0 : index
      %35 = vector.load %arg10[%c0_35, %c0_36, %c0_37] : memref<4x8x1xf32, #tpu.memory_space<vmem>>, vector<4x8x1xf32>
      %36 = tpu.reciprocal %35 : vector<4x8x1xf32> -> vector<4x8x1xf32>
      %c0_38 = arith.constant 0 : index
      %c0_39 = arith.constant 0 : index
      %c0_40 = arith.constant 0 : index
      %37 = vector.load %arg11[%c0_38, %c0_39, %c0_40] : memref<4x8x16xf32, #tpu.memory_space<vmem>>, vector<4x8x16xf32>
      %38 = vector.broadcast %36 : vector<4x8x1xf32> to vector<4x8x16xf32>
      %39 = arith.mulf %37, %38 : vector<4x8x16xf32>
      %40 = vector.extract_strided_slice %39 {offsets = [0, 0, 0], sizes = [1, 8, 16], strides = [1, 1, 1]} : vector<4x8x16xf32> to vector<1x8x16xf32>
      %41 = vector.shape_cast %40 : vector<1x8x16xf32> to vector<8x16xf32>
      %42 = vector.extract_strided_slice %39 {offsets = [1, 0, 0], sizes = [1, 8, 16], strides = [1, 1, 1]} : vector<4x8x16xf32> to vector<1x8x16xf32>
      %43 = vector.shape_cast %42 : vector<1x8x16xf32> to vector<8x16xf32>
      %44 = vector.extract_strided_slice %39 {offsets = [2, 0, 0], sizes = [1, 8, 16], strides = [1, 1, 1]} : vector<4x8x16xf32> to vector<1x8x16xf32>
      %45 = vector.shape_cast %44 : vector<1x8x16xf32> to vector<8x16xf32>
      %46 = vector.extract_strided_slice %39 {offsets = [3, 0, 0], sizes = [1, 8, 16], strides = [1, 1, 1]} : vector<4x8x16xf32> to vector<1x8x16xf32>
      %47 = vector.shape_cast %46 : vector<1x8x16xf32> to vector<8x16xf32>
      %48 = tpu.concatenate %41, %43, %45, %47 in 1 : vector<8x16xf32>, vector<8x16xf32>, vector<8x16xf32>, vector<8x16xf32> -> vector<8x64xf32>
      %c0_41 = arith.constant 0 : index
      %c0_42 = arith.constant 0 : index
      %49 = vector.load %arg6[%c0_41, %c0_42] : memref<64x64xf32, #tpu.memory_space<vmem>>, vector<64x64xf32>
      %cst_43 = arith.constant dense<0.000000e+00> : vector<8x64xf32>
      %50 = tpu.matmul %48, %49, %cst_43 {dimension_numbers = #tpu.dot_dimension_numbers<[1], [0], [0], [1], [0, 0, 1, 1], [], []>} : vector<8x64xf32>, vector<64x64xf32>, vector<8x64xf32> -> vector<8x64xf32>
      %c0_44 = arith.constant 0 : index
      %c0_45 = arith.constant 0 : index
      %51 = vector.load %arg7[%c0_44, %c0_45] : memref<1x64xf32, #tpu.memory_space<vmem>>, vector<1x64xf32>
      %52 = vector.broadcast %51 : vector<1x64xf32> to vector<8x64xf32>
      %53 = arith.addf %50, %52 : vector<8x64xf32>
      %c0_46 = arith.constant 0 : index
      %c0_47 = arith.constant 0 : index
      %c0_48 = arith.constant 0 : index
      %54 = vector.load %arg8[%c0_46, %c0_47, %c0_48] : memref<1x8x64xf32, #tpu.memory_space<vmem>>, vector<1x8x64xf32>
      %55 = vector.shape_cast %54 : vector<1x8x64xf32> to vector<8x64xf32>
      %56 = vector.shape_cast %53 : vector<8x64xf32> to vector<1x8x64xf32>
      tpu.vector_store %arg8[%c0_46, %c0_47, %c0_48], %56 {strides = array<i32>} : memref<1x8x64xf32, #tpu.memory_space<vmem>>, vector<1x8x64xf32>,
    } else {
    }
    return
  }
  func.func @transform_0(%arg0: i32, %arg1: i32, %arg2: i32) -> (i32, i32, i32, i32) {
    %c0_i32 = arith.constant 0 : i32
    %c0_i32_0 = arith.constant 0 : i32
    %c0_i32_1 = arith.constant 0 : i32
    return %arg0, %c0_i32, %arg1, %c0_i32_0 : i32, i32, i32, i32
  }
  func.func @transform_1(%arg0: i32, %arg1: i32, %arg2: i32) -> (i32, i32, i32, i32) {
    %c0_i32 = arith.constant 0 : i32
    %c0_i32_0 = arith.constant 0 : i32
    %c0_i32_1 = arith.constant 0 : i32
    return %arg0, %c0_i32, %arg2, %c0_i32_0 : i32, i32, i32, i32
  }
  func.func @transform_2(%arg0: i32, %arg1: i32, %arg2: i32) -> (i32, i32, i32, i32) {
    %c0_i32 = arith.constant 0 : i32
    %c0_i32_0 = arith.constant 0 : i32
    %c0_i32_1 = arith.constant 0 : i32
    return %arg0, %c0_i32, %arg2, %c0_i32_0 : i32, i32, i32, i32
  }
  func.func @transform_3(%arg0: i32, %arg1: i32, %arg2: i32) -> (i32, i32) {
    %c0_i32 = arith.constant 0 : i32
    %c0_i32_0 = arith.constant 0 : i32
    %c0_i32_1 = arith.constant 0 : i32
    return %c0_i32, %c0_i32_0 : i32, i32
  }
  func.func @transform_4(%arg0: i32, %arg1: i32, %arg2: i32) -> (i32, i32) {
    %c0_i32 = arith.constant 0 : i32
    %c0_i32_0 = arith.constant 0 : i32
    %c0_i32_1 = arith.constant 0 : i32
    return %c0_i32, %c0_i32_0 : i32, i32
  }
  func.func @transform_5(%arg0: i32, %arg1: i32, %arg2: i32) -> (i32, i32, i32) {
    %c0_i32 = arith.constant 0 : i32
    %c0_i32_0 = arith.constant 0 : i32
    return %arg0, %arg1, %c0_i32 : i32, i32, i32
  }
}

</mosaic_0001>

<llo_original>
// kernel: tpu_custom_call.1
$region0: #{tpu_custom_call.1}
  #allocation0 [shape = 'u32[]', space=smem, size = 0x4, offset = 0x4, fixed_abs, tag = 'smem constant byte address 0x4 - core index']
  #allocation1 [shape = 'u32[144,128]{1,0:T(1,128)}', space=vmem, size = 0x12000, scoped, tag = 'internal scratch']
  #allocation2 [shape = 'f32[4,8,1]{2,1,0:T(8,128)}', space=vmem, size = 0x4000, scoped, tag = 'scratch operand']
  #allocation3 [shape = 'f32[4,8,1]{2,1,0:T(8,128)}', space=vmem, size = 0x4000, scoped, tag = 'scratch operand']
  #allocation4 [shape = 'f32[4,8,16]{2,1,0:T(8,128)}', space=vmem, size = 0x4000, scoped, tag = 'scratch operand']
  %s0 = inlined_call_operand.hbm [shape: f32[2,4,8,16], index: 0, kind: input, shape index: {}]
  %s1 = inlined_call_operand.hbm [shape: f32[2,4,8,16], index: 1, kind: input, shape index: {}]
  %s2 = inlined_call_operand.hbm [shape: f32[2,4,8,16], index: 2, kind: input, shape index: {}]
  %s3 = inlined_call_operand.hbm [shape: f32[64,64], index: 3, kind: input, shape index: {}]
  %s4 = inlined_call_operand.vmem [shape: f32[1,64], index: 4, kind: input, shape index: {}]
  %s5 = inlined_call_operand.hbm [shape: f32[2,8,64], index: 5, kind: output, shape index: {}]
  %s6 = sld [smem:[#allocation0]]
  $region77: #{tpu_custom_call.1} parent=0
    _
  %s8 = ssub.s32 1, %s6
  %s9 = scalar_select 0, %s8, %s6
  $region1: #{tpu_custom_call.1} parent=0
    #allocation5 [shape = 'u8[32768]{0}', space=vmem, size = 0x8000, scoped, tag = 'input window, operand 0']
    #allocation6 [shape = 's32[2]{0}', space=sflag, size = 0x8, scoped, tag = 'scoped memory for tpu_custom_call.1']
    #allocation7 [shape = 's32[2]{0}', space=sflag, size = 0x8, scoped, tag = 'scoped memory for tpu_custom_call.1']
    #allocation8 [shape = 'u8[32768]{0}', space=vmem, size = 0x8000, scoped, tag = 'input window, operand 1']
    #allocation9 [shape = 's32[2]{0}', space=sflag, size = 0x8, scoped, tag = 'scoped memory for tpu_custom_call.1']
    #allocation10 [shape = 'u8[32768]{0}', space=vmem, size = 0x8000, scoped, tag = 'input window, operand 2']
    #allocation11 [shape = 'u8[32768]{0}', space=vmem, size = 0x8000, scoped, tag = 'input window, operand 3, single buffered']
    #allocation12 [shape = 's32[1]{0}', space=sflag, size = 0x4, scoped, tag = 'scoped memory for tpu_custom_call.1']
    #allocation13 [shape = 'u8[8192]{0}', space=vmem, size = 0x2000, scoped, tag = 'output window, operand 0']
    %10 = vsyncpa [#allocation6], 0
    %s11 = scalar_lea.sflag [#allocation6], 1
    %12 = vsyncpa %s11, 0
    %13 = vsyncpa [#allocation9], 0
    %s14 = scalar_lea.sflag [#allocation9], 1
    %15 = vsyncpa %s14, 0
    %16 = vsyncpa [#allocation12], 0
    %17 = vsyncpa [#allocation7], 0
    %s18 = scalar_lea.sflag [#allocation7], 1
    %19 = vsyncpa %s18, 0
    loop: start=0, step=1, limit=4
    $region2: #{tpu_custom_call.1} parent=1 // loop_pre_header
      _
    $region3: #{tpu_custom_call.1} parent=1 // loop_header
      %s21 = sphi 0, %s25
      %p22 = scmp.ge.s32.totalorder %s21, 4
      %s28 = sphi 0, %s47
      %s29 = sphi 0, %s43
      %s30 = sphi 0, %s39
      %s31 = sphi 0, %s28
      %s32 = sphi 0, %s29
      %s33 = sphi 0, %s30
      %s34 = sphi 0, %s31
      %s35 = sphi 0, %s32
      %s36 = sphi 0, %s33
      %s52 = sphi 0, %s54
      %s55 = sphi 0, %s52
      %s56 = sphi 0, %s55
      %s72 = sphi 0, %s56
      %s80 = sphi 0, %s82
      %s83 = sphi 0, %s80
      %s84 = sphi 0, %s83
      %s100 = sphi 0, %s84
      %s108 = sphi 0, %s110
      %s111 = sphi 0, %s108
      %s112 = sphi 0, %s111
      %s128 = sphi 0, %s112
      %s132 = sphi 0, %s132
      %s134 = sphi 0, %s132
      %s135 = sphi 0, %s134
      %s149 = sphi 0, %s135
      %s153 = sphi 0, %s153
      %s155 = sphi 0, %s153
      %s156 = sphi 0, %s155
      %s170 = sphi 0, %s156
      %s178 = sphi 0, %s180
      %s181 = sphi 0, %s178
      %s182 = sphi 0, %s181
      %s198 = sphi 0, %s182
    $region4: #{tpu_custom_call.1} parent=1 // loop_header_branch
      %24 = sbr.rel (%p22) target = $region8
    $region5: #{tpu_custom_call.1} parent=1 // loop_body
      %s26 = ssub.s32 %s21, 1
      %s27 = ssub.s32 %s21, 2
      %s37 = sadd.s32 1, %s30
      %p38 = scmp.ge.s32.totalorder %s37, 1
      %s39 = scalar_select %p38, 0, %s37
      %s40 = sadd.s32 1, %s29
      %s41 = scalar_select %p38, %s40, %s29
      %p42 = scmp.ge.s32.totalorder %s41, 1
      %s43 = scalar_select %p42, 0, %s41
      %s44 = sadd.s32 1, %s28
      %s45 = scalar_select %p42, %s44, %s28
      %p46 = scmp.ge.s32.totalorder %s45, 2
      %s47 = scalar_select %p46, 0, %s45
      %s48 = ssub.s32 %s28, %s47
      %s49 = ssub.s32 %s29, %s43
      %s50 = sor.u32 %s48, %s49
      %p51 = scmp.eq.s32.totalorder %s50, 0
      %s53 = sadd.s32 %s52, 1
      %s54 = scalar_select %p51, %s52, %s53
      %p57 = pneg %p51
      %p58 = scmp.eq.s32.totalorder %s21, 1
      %p59 = por %p57, %p58
      %p60 = scmp.ne.s32.totalorder %s52, %s55
      %p61 = scmp.eq.s32.totalorder %s21, 0
      %p62 = por %p60, %p61
      %p63 = scmp.ne.s32.totalorder %s52, %s55
      %p64 = scmp.eq.s32.totalorder %s26, 1
      %p65 = por %p63, %p64
      %p66 = scmp.ne.s32.totalorder %s55, %s56
      %p67 = scmp.eq.s32.totalorder %s26, 0
      %p68 = por %p66, %p67
      %p69 = scmp.ne.s32.totalorder %s55, %s56
      %p70 = scmp.eq.s32.totalorder %s27, 1
      %p71 = por %p69, %p70
      %p73 = scmp.ne.s32.totalorder %s56, %s72
      %p74 = scmp.eq.s32.totalorder %s27, 0
      %p75 = por %p73, %p74
      %s76 = ssub.s32 %s28, %s47
      %s77 = ssub.s32 %s30, %s39
      %s78 = sor.u32 %s76, %s77
      %p79 = scmp.eq.s32.totalorder %s78, 0
      %s81 = sadd.s32 %s80, 1
      %s82 = scalar_select %p79, %s80, %s81
      %p85 = pneg %p79
      %p86 = scmp.eq.s32.totalorder %s21, 1
      %p87 = por %p85, %p86
      %p88 = scmp.ne.s32.totalorder %s80, %s83
      %p89 = scmp.eq.s32.totalorder %s21, 0
      %p90 = por %p88, %p89
      %p91 = scmp.ne.s32.totalorder %s80, %s83
      %p92 = scmp.eq.s32.totalorder %s26, 1
      %p93 = por %p91, %p92
      %p94 = scmp.ne.s32.totalorder %s83, %s84
      %p95 = scmp.eq.s32.totalorder %s26, 0
      %p96 = por %p94, %p95
      %p97 = scmp.ne.s32.totalorder %s83, %s84
      %p98 = scmp.eq.s32.totalorder %s27, 1
      %p99 = por %p97, %p98
      %p101 = scmp.ne.s32.totalorder %s84, %s100
      %p102 = scmp.eq.s32.totalorder %s27, 0
      %p103 = por %p101, %p102
      %s104 = ssub.s32 %s28, %s47
      %s105 = ssub.s32 %s30, %s39
      %s106 = sor.u32 %s104, %s105
      %p107 = scmp.eq.s32.totalorder %s106, 0
      %s109 = sadd.s32 %s108, 1
      %s110 = scalar_select %p107, %s108, %s109
      %p113 = pneg %p107
      %p114 = scmp.eq.s32.totalorder %s21, 1
      %p115 = por %p113, %p114
      %p116 = scmp.ne.s32.totalorder %s108, %s111
      %p117 = scmp.eq.s32.totalorder %s21, 0
      %p118 = por %p116, %p117
      %p119 = scmp.ne.s32.totalorder %s108, %s111
      %p120 = scmp.eq.s32.totalorder %s26, 1
      %p121 = por %p119, %p120
      %p122 = scmp.ne.s32.totalorder %s111, %s112
      %p123 = scmp.eq.s32.totalorder %s26, 0
      %p124 = por %p122, %p123
      %p125 = scmp.ne.s32.totalorder %s111, %s112
      %p126 = scmp.eq.s32.totalorder %s27, 1
      %p127 = por %p125, %p126
      %p129 = scmp.ne.s32.totalorder %s112, %s128
      %p130 = scmp.eq.s32.totalorder %s27, 0
      %p131 = por %p129, %p130
      %s133 = sadd.s32 %s132, 1
      %p136 = scmp.eq.s32.totalorder %s21, 1
      %p137 = scmp.ne.s32.totalorder %s132, %s134
      %p138 = scmp.eq.s32.totalorder %s21, 0
      %p139 = por %p137, %p138
      %p140 = scmp.ne.s32.totalorder %s132, %s134
      %p141 = scmp.eq.s32.totalorder %s26, 1
      %p142 = por %p140, %p141
      %p143 = scmp.ne.s32.totalorder %s134, %s135
      %p144 = scmp.eq.s32.totalorder %s26, 0
      %p145 = por %p143, %p144
      %p146 = scmp.ne.s32.totalorder %s134, %s135
      %p147 = scmp.eq.s32.totalorder %s27, 1
      %p148 = por %p146, %p147
      %p150 = scmp.ne.s32.totalorder %s135, %s149
      %p151 = scmp.eq.s32.totalorder %s27, 0
      %p152 = por %p150, %p151
      %s154 = sadd.s32 %s153, 1
      %p157 = scmp.eq.s32.totalorder %s21, 1
      %p158 = scmp.ne.s32.totalorder %s153, %s155
      %p159 = scmp.eq.s32.totalorder %s21, 0
      %p160 = por %p158, %p159
      %p161 = scmp.ne.s32.totalorder %s153, %s155
      %p162 = scmp.eq.s32.totalorder %s26, 1
      %p163 = por %p161, %p162
      %p164 = scmp.ne.s32.totalorder %s155, %s156
      %p165 = scmp.eq.s32.totalorder %s26, 0
      %p166 = por %p164, %p165
      %p167 = scmp.ne.s32.totalorder %s155, %s156
      %p168 = scmp.eq.s32.totalorder %s27, 1
      %p169 = por %p167, %p168
      %p171 = scmp.ne.s32.totalorder %s156, %s170
      %p172 = scmp.eq.s32.totalorder %s27, 0
      %p173 = por %p171, %p172
      %s174 = ssub.s32 %s28, %s47
      %s175 = ssub.s32 %s29, %s43
      %s176 = sor.u32 %s174, %s175
      %p177 = scmp.eq.s32.totalorder %s176, 0
      %s179 = sadd.s32 %s178, 1
      %s180 = scalar_select %p177, %s178, %s179
      %p183 = pneg %p177
      %p184 = scmp.eq.s32.totalorder %s21, 1
      %p185 = por %p183, %p184
      %p186 = scmp.ne.s32.totalorder %s178, %s181
      %p187 = scmp.eq.s32.totalorder %s21, 0
      %p188 = por %p186, %p187
      %p189 = scmp.ne.s32.totalorder %s178, %s181
      %p190 = scmp.eq.s32.totalorder %s26, 1
      %p191 = por %p189, %p190
      %p192 = scmp.ne.s32.totalorder %s181, %s182
      %p193 = scmp.eq.s32.totalorder %s26, 0
      %p194 = por %p192, %p193
      %p195 = scmp.ne.s32.totalorder %s181, %s182
      %p196 = scmp.eq.s32.totalorder %s27, 1
      %p197 = por %p195, %p196
      %p199 = scmp.ne.s32.totalorder %s182, %s198
      %p200 = scmp.eq.s32.totalorder %s27, 0
      %p201 = por %p199, %p200
      %p202 = scmp.le.s32.totalorder 1, %s21
      %p203 = scmp.lt.s32.totalorder %s21, 3
      %p204 = pnand %p202, %p203
      %p205 = pneg %p204
      // Predicated region
      $region9: #{tpu_custom_call.1} parent=5 // pred_check
        _
      $region10: #{tpu_custom_call.1} parent=5 // pred_check_branch
        %207 = sbr.rel (%p204) target = $region12
      $region11: #{tpu_custom_call.1} parent=5 // pred_region
        %s208 = ssub.s32 %s21, 1
        // Predicated region
        $region13: #{tpu_custom_call.1} parent=11 // pred_check
          %p209 = pneg %p145
        $region14: #{tpu_custom_call.1} parent=11 // pred_check_branch
          %211 = sbr.rel (%p209) target = $region16
        $region15: #{tpu_custom_call.1} parent=11 // pred_region
          %s213 = ssub.s32 1024, 1024
          %214 = vsyncadd [#allocation12], %s213
          %s215 = sshll.u32 [#allocation11], 4
          %s216 = int_to_ptr.vmem [resolvable:$true] %s215
          %221 = dma.hbm_to_vmem [thread:$0]  %s3, 1024, %s216, [#allocation12], 128, 128, 8
        $region16: #{tpu_custom_call.1} parent=11 // pred_fallthru
          _
        // Predicated region
        $region17: #{tpu_custom_call.1} parent=11 // pred_check
          %p222 = pneg %p166
        $region18: #{tpu_custom_call.1} parent=11 // pred_check_branch
          %224 = sbr.rel (%p222) target = $region20
        $region19: #{tpu_custom_call.1} parent=11 // pred_region
          _
        $region20: #{tpu_custom_call.1} parent=11 // pred_fallthru
          _
      $region12: #{tpu_custom_call.1} parent=5 // pred_fallthru
        _
      %p225 = scmp.lt.s32.totalorder %s21, 2
      // Predicated region
      $region21: #{tpu_custom_call.1} parent=5 // pred_check
        %p226 = pneg %p225
      $region22: #{tpu_custom_call.1} parent=5 // pred_check_branch
        %228 = sbr.rel (%p226) target = $region24
      $region23: #{tpu_custom_call.1} parent=5 // pred_region
        // Predicated region
        $region25: #{tpu_custom_call.1} parent=23 // pred_check
          %p229 = pneg %p62
        $region26: #{tpu_custom_call.1} parent=23 // pred_check_branch
          %231 = sbr.rel (%p229) target = $region28
        $region27: #{tpu_custom_call.1} parent=23 // pred_region
          %s232 = sand.u32 %s52, 1
          %s233 = scalar_lea.sflag [#allocation6], %s232
          %s234 = sand.u32 %s52, 1
          %s235 = smul.addr %s234, 32
          %s236 = scalar_lea.vmem [#allocation5], %s235
          %s238 = ssub.s32 512, 512
          %239 = vsyncadd %s233, %s238
          %s240 = smul.addr %s28, 4
          %s241 = sadd.s32 %s29, %s240
          %s242 = smul.addr %s241, 128
          %s243 = scalar_lea.hbm %s0, %s242
          %s244 = sshll.u32 %s236, 4
          %s245 = int_to_ptr.vmem [resolvable:$true] %s244
          %250 = dma.hbm_to_vmem [thread:$0]  %s243, 512, %s245, %s233, 128, 128, 8
        $region28: #{tpu_custom_call.1} parent=23 // pred_fallthru
          _
        // Predicated region
        $region29: #{tpu_custom_call.1} parent=23 // pred_check
          %p251 = pneg %p90
        $region30: #{tpu_custom_call.1} parent=23 // pred_check_branch
          %253 = sbr.rel (%p251) target = $region32
        $region31: #{tpu_custom_call.1} parent=23 // pred_region
          %s254 = sand.u32 %s21, 1
          %s255 = scalar_lea.sflag [#allocation9], %s254
          %s256 = sand.u32 %s80, 1
          %s257 = smul.addr %s256, 32
          %s258 = scalar_lea.vmem [#allocation8], %s257
          %s260 = ssub.s32 512, 512
          %261 = vsyncadd %s255, %s260
          %s262 = smul.addr %s28, 4
          %s263 = sadd.s32 %s30, %s262
          %s264 = smul.addr %s263, 128
          %s265 = scalar_lea.hbm %s1, %s264
          %s266 = sshll.u32 %s258, 4
          %s267 = int_to_ptr.vmem [resolvable:$true] %s266
          %272 = dma.hbm_to_vmem [thread:$0]  %s265, 512, %s267, %s255, 128, 128, 8
        $region32: #{tpu_custom_call.1} parent=23 // pred_fallthru
          _
        // Predicated region
        $region33: #{tpu_custom_call.1} parent=23 // pred_check
          %p273 = pneg %p118
        $region34: #{tpu_custom_call.1} parent=23 // pred_check_branch
          %275 = sbr.rel (%p273) target = $region36
        $region35: #{tpu_custom_call.1} parent=23 // pred_region
          %s276 = sand.u32 %s21, 1
          %s277 = scalar_lea.sflag [#allocation9], %s276
          %s278 = sand.u32 %s108, 1
          %s279 = smul.addr %s278, 32
          %s280 = scalar_lea.vmem [#allocation10], %s279
          %s282 = ssub.s32 512, 512
          %283 = vsyncadd %s277, %s282
          %s284 = smul.addr %s28, 4
          %s285 = sadd.s32 %s30, %s284
          %s286 = smul.addr %s285, 128
          %s287 = scalar_lea.hbm %s2, %s286
          %s288 = sshll.u32 %s280, 4
          %s289 = int_to_ptr.vmem [resolvable:$true] %s288
          %294 = dma.hbm_to_vmem [thread:$0]  %s287, 512, %s289, %s277, 128, 128, 8
        $region36: #{tpu_custom_call.1} parent=23 // pred_fallthru
          _
      $region24: #{tpu_custom_call.1} parent=5 // pred_fallthru
        _
      %p295 = scmp.le.s32.totalorder 1, %s21
      %p296 = scmp.lt.s32.totalorder %s21, 3
      %p297 = pnand %p295, %p296
      %p298 = pneg %p297
      // Predicated region
      $region37: #{tpu_custom_call.1} parent=5 // pred_check
        _
      $region38: #{tpu_custom_call.1} parent=5 // pred_check_branch
        %300 = sbr.rel (%p297) target = $region40
      $region39: #{tpu_custom_call.1} parent=5 // pred_region
        %s301 = ssub.s32 %s21, 1
        %s302 = sand.u32 %s55, 1
        %s303 = scalar_lea.sflag [#allocation6], %s302
        %s304 = sand.u32 %s55, 1
        %s305 = smul.addr %s304, 32
        %s306 = scalar_lea.vmem [#allocation5], %s305
        // Predicated region
        $region41: #{tpu_custom_call.1} parent=39 // pred_check
          %p307 = pneg %p68
        $region42: #{tpu_custom_call.1} parent=39 // pred_check_branch
          %309 = sbr.rel (%p307) target = $region44
        $region43: #{tpu_custom_call.1} parent=39 // pred_region
          %310 = dma.done %s303, 512
        $region44: #{tpu_custom_call.1} parent=39 // pred_fallthru
          _
        %s311 = sand.u32 %s26, 1
        %s312 = scalar_lea.sflag [#allocation9], %s311
        %s313 = sand.u32 %s83, 1
        %s314 = smul.addr %s313, 32
        %s315 = scalar_lea.vmem [#allocation8], %s314
        // Predicated region
        $region45: #{tpu_custom_call.1} parent=39 // pred_check
          %p316 = pneg %p96
        $region46: #{tpu_custom_call.1} parent=39 // pred_check_branch
          %318 = sbr.rel (%p316) target = $region48
        $region47: #{tpu_custom_call.1} parent=39 // pred_region
          %319 = dma.done %s312, 512
        $region48: #{tpu_custom_call.1} parent=39 // pred_fallthru
          _
        %s320 = sand.u32 %s26, 1
        %s321 = scalar_lea.sflag [#allocation9], %s320
        %s322 = sand.u32 %s111, 1
        %s323 = smul.addr %s322, 32
        %s324 = scalar_lea.vmem [#allocation10], %s323
        // Predicated region
        $region49: #{tpu_custom_call.1} parent=39 // pred_check
          %p325 = pneg %p124
        $region50: #{tpu_custom_call.1} parent=39 // pred_check_branch
          %327 = sbr.rel (%p325) target = $region52
        $region51: #{tpu_custom_call.1} parent=39 // pred_region
          %328 = dma.done %s321, 512
        $region52: #{tpu_custom_call.1} parent=39 // pred_fallthru
          _
        // Predicated region
        $region53: #{tpu_custom_call.1} parent=39 // pred_check
          %p329 = pneg %p145
        $region54: #{tpu_custom_call.1} parent=39 // pred_check_branch
          %331 = sbr.rel (%p329) target = $region56
        $region55: #{tpu_custom_call.1} parent=39 // pred_region
          %332 = dma.done [#allocation12], 1024
        $region56: #{tpu_custom_call.1} parent=39 // pred_fallthru
          _
        %s333 = sand.u32 %s55, 1
        %s334 = scalar_lea.sflag [#allocation6], %s333
        %s335 = sand.u32 %s55, 1
        %s336 = smul.addr %s335, 32
        %s337 = scalar_lea.vmem [#allocation5], %s336
        %p338 = pneg %p68
        %p339 = pneg %p65
        %s340 = sand.u32 %s26, 1
        %s341 = scalar_lea.sflag [#allocation9], %s340
        %s342 = sand.u32 %s83, 1
        %s343 = smul.addr %s342, 32
        %s344 = scalar_lea.vmem [#allocation8], %s343
        %p345 = pneg %p96
        %p346 = pneg %p93
        %s347 = sand.u32 %s26, 1
        %s348 = scalar_lea.sflag [#allocation9], %s347
        %s349 = sand.u32 %s111, 1
        %s350 = smul.addr %s349, 32
        %s351 = scalar_lea.vmem [#allocation10], %s350
        %p352 = pneg %p124
        %p353 = pneg %p121
        %p354 = pneg %p145
        %p355 = pneg %p142
        %p356 = pneg %p166
        %p357 = pneg %p163
        %p358 = pneg %p194
        %p359 = pneg %p191
        %s360 = sand.u32 %s181, 1
        %s361 = scalar_lea.sflag [#allocation7], %s360
        %s362 = sand.u32 %s181, 1
        %s363 = smul.addr %s362, 8
        %s364 = scalar_lea.vmem [#allocation13], %s363
        %p365 = scmp.eq.s32.totalorder %s33, 0
        // Predicated region
        $region57: #{tpu_custom_call.1} parent=39 // pred_check
          %p366 = pneg %p365
        $region58: #{tpu_custom_call.1} parent=39 // pred_check_branch
          %368 = sbr.rel (%p366) target = $region60
        $region59: #{tpu_custom_call.1} parent=39 // pred_region
          %vm369 = vcmask 7168
          %370 = vst.msk [vmem:[#allocation2] sm:$0xff] %vm369, -inf
          %371 = vst.msk [vmem:[#allocation2 + $0x8] sm:$0xff] %vm369, -inf
          %372 = vst.msk [vmem:[#allocation2 + $0x10] sm:$0xff] %vm369, -inf
          %373 = vst.msk [vmem:[#allocation2 + $0x18] sm:$0xff] %vm369, -inf
          %374 = vst.msk [vmem:[#allocation3] sm:$0xff] %vm369, 0.0
          %375 = vst.msk [vmem:[#allocation3 + $0x8] sm:$0xff] %vm369, 0.0
          %376 = vst.msk [vmem:[#allocation3 + $0x10] sm:$0xff] %vm369, 0.0
          %377 = vst.msk [vmem:[#allocation3 + $0x18] sm:$0xff] %vm369, 0.0
          %vm378 = vcmask 130048
          %379 = vst.msk [vmem:[#allocation4] sm:$0xff] %vm378, 0.0
          %380 = vst.msk [vmem:[#allocation4 + $0x8] sm:$0xff] %vm378, 0.0
          %381 = vst.msk [vmem:[#allocation4 + $0x10] sm:$0xff] %vm378, 0.0
          %382 = vst.msk [vmem:[#allocation4 + $0x18] sm:$0xff] %vm378, 0.0
        $region60: #{tpu_custom_call.1} parent=39 // pred_fallthru
          _
        %v383 = vld [vmem:[%s306] sm:$0xff]
        %v384 = vld [vmem:[%s306 + $0x8] sm:$0xff]
        %v385 = vld [vmem:[%s306 + $0x10] sm:$0xff]
        %v386 = vld [vmem:[%s306 + $0x18] sm:$0xff]
        %v387 = vld [vmem:[%s315] sm:$0xff]
        %v388 = vld [vmem:[%s315 + $0x8] sm:$0xff]
        %v389 = vld [vmem:[%s315 + $0x10] sm:$0xff]
        %v390 = vld [vmem:[%s315 + $0x18] sm:$0xff]
        %v391 = vld [vmem:[%s324] sm:$0xff]
        %v392 = vld [vmem:[%s324 + $0x8] sm:$0xff]
        %v393 = vld [vmem:[%s324 + $0x10] sm:$0xff]
        %v394 = vld [vmem:[%s324 + $0x18] sm:$0xff]
        %vm395 = vcmask 130048
        %v397 = vsel %vm395, %v383, 0
        %v400 = vsel %vm395, %v387, 0
        %402 = vmatprep.subr.mxu0 0.0
        %403 = vmatpush1.xpose.msra.mxu0 0.0
        %404 = vmatprep.subr.mxu0 0.0
        %405 = vmatpush1.xpose.msra.mxu0 0.0
        %406 = vmatprep.subr.mxu0 0.0
        %407 = vmatpush1.xpose.msra.mxu0 0.0
        %408 = vmatprep.subr.mxu0 0.0
        %409 = vmatpush1.xpose.msra.mxu0 0.0
        %410 = vmatprep.subr.mxu0 0.0
        %411 = vmatpush1.xpose.msra.mxu0 0.0
        %412 = vmatprep.subr.mxu0 0.0
        %413 = vmatpush1.xpose.msra.mxu0 0.0
        %414 = vmatprep.subr.mxu0 0.0
        %415 = vmatpush1.xpose.msra.mxu0 0.0
        %416 = vmatprep.subr.mxu0 0.0
        %417 = vmatpush1.xpose.msra.mxu0 0.0
        %418 = vmatprep.subr.mxu0 0.0
        %419 = vmatpush1.xpose.msra.mxu0 0.0
        %420 = vmatprep.subr.mxu0 0.0
        %421 = vmatpush1.xpose.msra.mxu0 0.0
        %422 = vmatprep.subr.mxu0 0.0
        %423 = vmatpush1.xpose.msra.mxu0 0.0
        %424 = vmatprep.subr.mxu0 0.0
        %425 = vmatpush1.xpose.msra.mxu0 0.0
        %426 = vmatprep.subr.mxu0 0.0
        %427 = vmatpush1.xpose.msra.mxu0 0.0
        %428 = vmatprep.subr.mxu0 0.0
        %429 = vmatpush1.xpose.msra.mxu0 0.0
        %430 = vmatprep.subr.mxu0 0.0
        %431 = vmatpush1.xpose.msra.mxu0 0.0
        %432 = vmatprep.subr.mxu0 0.0
        %433 = vmatpush1.xpose.msra.mxu0 %v400
        %434 = vmatprep.subr.mxu0 0.0
        %435 = vmatpush2.xpose.msra.mxu0 0.0
        %436 = vmatprep.subr.mxu0 0.0
        %437 = vmatpush2.xpose.msra.mxu0 0.0
        %438 = vmatprep.subr.mxu0 0.0
        %439 = vmatpush2.xpose.msra.mxu0 0.0
        %440 = vmatprep.subr.mxu0 0.0
        %441 = vmatpush2.xpose.msra.mxu0 0.0
        %442 = vmatprep.subr.mxu0 0.0
        %443 = vmatpush2.xpose.msra.mxu0 0.0
        %444 = vmatprep.subr.mxu0 0.0
        %445 = vmatpush2.xpose.msra.mxu0 0.0
        %446 = vmatprep.subr.mxu0 0.0
        %447 = vmatpush2.xpose.msra.mxu0 0.0
        %448 = vmatprep.subr.mxu0 0.0
        %449 = vmatpush2.xpose.msra.mxu0 0.0
        %450 = vmatprep.subr.mxu0 0.0
        %451 = vmatpush2.xpose.msra.mxu0 0.0
        %452 = vmatprep.subr.mxu0 0.0
        %453 = vmatpush2.xpose.msra.mxu0 0.0
        %454 = vmatprep.subr.mxu0 0.0
        %455 = vmatpush2.xpose.msra.mxu0 0.0
        %456 = vmatprep.subr.mxu0 0.0
        %457 = vmatpush2.xpose.msra.mxu0 0.0
        %458 = vmatprep.subr.mxu0 0.0
        %459 = vmatpush2.xpose.msra.mxu0 0.0
        %460 = vmatprep.subr.mxu0 0.0
        %461 = vmatpush2.xpose.msra.mxu0 0.0
        %462 = vmatprep.subr.mxu0 0.0
        %463 = vmatpush2.xpose.msra.mxu0 0.0
        %464 = vmatprep.subr.mxu0 0.0
        %465 = vmatpush2.xpose.msra.mxu0 0.0
        %466 = vmatprep.mubr.f32.mxu0 0.0
        %467 = vmatmul.mubr.f32.gmra.mxu0 %v397
        %v468 = vpop.f32.mrf.mxu0
        %v469 = vadd.f32 0.0, %v468
        %v470 = vpop.f32.mrf.mxu0
        %471 = vdwg.mxu0
        %v473 = vsel %vm395, %v384, 0
        %v476 = vsel %vm395, %v388, 0
        %478 = vmatprep.subr.mxu0 0.0
        %479 = vmatpush1.xpose.msra.mxu0 0.0
        %480 = vmatprep.subr.mxu0 0.0
        %481 = vmatpush1.xpose.msra.mxu0 0.0
        %482 = vmatprep.subr.mxu0 0.0
        %483 = vmatpush1.xpose.msra.mxu0 0.0
        %484 = vmatprep.subr.mxu0 0.0
        %485 = vmatpush1.xpose.msra.mxu0 0.0
        %486 = vmatprep.subr.mxu0 0.0
        %487 = vmatpush1.xpose.msra.mxu0 0.0
        %488 = vmatprep.subr.mxu0 0.0
        %489 = vmatpush1.xpose.msra.mxu0 0.0
        %490 = vmatprep.subr.mxu0 0.0
        %491 = vmatpush1.xpose.msra.mxu0 0.0
        %492 = vmatprep.subr.mxu0 0.0
        %493 = vmatpush1.xpose.msra.mxu0 0.0
        %494 = vmatprep.subr.mxu0 0.0
        %495 = vmatpush1.xpose.msra.mxu0 0.0
        %496 = vmatprep.subr.mxu0 0.0
        %497 = vmatpush1.xpose.msra.mxu0 0.0
        %498 = vmatprep.subr.mxu0 0.0
        %499 = vmatpush1.xpose.msra.mxu0 0.0
        %500 = vmatprep.subr.mxu0 0.0
        %501 = vmatpush1.xpose.msra.mxu0 0.0
        %502 = vmatprep.subr.mxu0 0.0
        %503 = vmatpush1.xpose.msra.mxu0 0.0
        %504 = vmatprep.subr.mxu0 0.0
        %505 = vmatpush1.xpose.msra.mxu0 0.0
        %506 = vmatprep.subr.mxu0 0.0
        %507 = vmatpush1.xpose.msra.mxu0 0.0
        %508 = vmatprep.subr.mxu0 0.0
        %509 = vmatpush1.xpose.msra.mxu0 %v476
        %510 = vmatprep.subr.mxu0 0.0
        %511 = vmatpush2.xpose.msra.mxu0 0.0
        %512 = vmatprep.subr.mxu0 0.0
        %513 = vmatpush2.xpose.msra.mxu0 0.0
        %514 = vmatprep.subr.mxu0 0.0
        %515 = vmatpush2.xpose.msra.mxu0 0.0
        %516 = vmatprep.subr.mxu0 0.0
        %517 = vmatpush2.xpose.msra.mxu0 0.0
        %518 = vmatprep.subr.mxu0 0.0
        %519 = vmatpush2.xpose.msra.mxu0 0.0
        %520 = vmatprep.subr.mxu0 0.0
        %521 = vmatpush2.xpose.msra.mxu0 0.0
        %522 = vmatprep.subr.mxu0 0.0
        %523 = vmatpush2.xpose.msra.mxu0 0.0
        %524 = vmatprep.subr.mxu0 0.0
        %525 = vmatpush2.xpose.msra.mxu0 0.0
        %526 = vmatprep.subr.mxu0 0.0
        %527 = vmatpush2.xpose.msra.mxu0 0.0
        %528 = vmatprep.subr.mxu0 0.0
        %529 = vmatpush2.xpose.msra.mxu0 0.0
        %530 = vmatprep.subr.mxu0 0.0
        %531 = vmatpush2.xpose.msra.mxu0 0.0
        %532 = vmatprep.subr.mxu0 0.0
        %533 = vmatpush2.xpose.msra.mxu0 0.0
        %534 = vmatprep.subr.mxu0 0.0
        %535 = vmatpush2.xpose.msra.mxu0 0.0
        %536 = vmatprep.subr.mxu0 0.0
        %537 = vmatpush2.xpose.msra.mxu0 0.0
        %538 = vmatprep.subr.mxu0 0.0
        %539 = vmatpush2.xpose.msra.mxu0 0.0
        %540 = vmatprep.subr.mxu0 0.0
        %541 = vmatpush2.xpose.msra.mxu0 0.0
        %542 = vmatprep.mubr.f32.mxu0 0.0
        %543 = vmatmul.mubr.f32.gmra.mxu0 %v473
        %v544 = vpop.f32.mrf.mxu0
        %v545 = vadd.f32 0.0, %v544
        %v546 = vpop.f32.mrf.mxu0
        %547 = vdwg.mxu0
        %v549 = vsel %vm395, %v385, 0
        %v552 = vsel %vm395, %v389, 0
        %554 = vmatprep.subr.mxu0 0.0
        %555 = vmatpush1.xpose.msra.mxu0 0.0
        %556 = vmatprep.subr.mxu0 0.0
        %557 = vmatpush1.xpose.msra.mxu0 0.0
        %558 = vmatprep.subr.mxu0 0.0
        %559 = vmatpush1.xpose.msra.mxu0 0.0
        %560 = vmatprep.subr.mxu0 0.0
        %561 = vmatpush1.xpose.msra.mxu0 0.0
        %562 = vmatprep.subr.mxu0 0.0
        %563 = vmatpush1.xpose.msra.mxu0 0.0
        %564 = vmatprep.subr.mxu0 0.0
        %565 = vmatpush1.xpose.msra.mxu0 0.0
        %566 = vmatprep.subr.mxu0 0.0
        %567 = vmatpush1.xpose.msra.mxu0 0.0
        %568 = vmatprep.subr.mxu0 0.0
        %569 = vmatpush1.xpose.msra.mxu0 0.0
        %570 = vmatprep.subr.mxu0 0.0
        %571 = vmatpush1.xpose.msra.mxu0 0.0
        %572 = vmatprep.subr.mxu0 0.0
        %573 = vmatpush1.xpose.msra.mxu0 0.0
        %574 = vmatprep.subr.mxu0 0.0
        %575 = vmatpush1.xpose.msra.mxu0 0.0
        %576 = vmatprep.subr.mxu0 0.0
        %577 = vmatpush1.xpose.msra.mxu0 0.0
        %578 = vmatprep.subr.mxu0 0.0
        %579 = vmatpush1.xpose.msra.mxu0 0.0
        %580 = vmatprep.subr.mxu0 0.0
        %581 = vmatpush1.xpose.msra.mxu0 0.0
        %582 = vmatprep.subr.mxu0 0.0
        %583 = vmatpush1.xpose.msra.mxu0 0.0
        %584 = vmatprep.subr.mxu0 0.0
        %585 = vmatpush1.xpose.msra.mxu0 %v552
        %586 = vmatprep.subr.mxu0 0.0
        %587 = vmatpush2.xpose.msra.mxu0 0.0
        %588 = vmatprep.subr.mxu0 0.0
        %589 = vmatpush2.xpose.msra.mxu0 0.0
        %590 = vmatprep.subr.mxu0 0.0
        %591 = vmatpush2.xpose.msra.mxu0 0.0
        %592 = vmatprep.subr.mxu0 0.0
        %593 = vmatpush2.xpose.msra.mxu0 0.0
        %594 = vmatprep.subr.mxu0 0.0
        %595 = vmatpush2.xpose.msra.mxu0 0.0
        %596 = vmatprep.subr.mxu0 0.0
        %597 = vmatpush2.xpose.msra.mxu0 0.0
        %598 = vmatprep.subr.mxu0 0.0
        %599 = vmatpush2.xpose.msra.mxu0 0.0
        %600 = vmatprep.subr.mxu0 0.0
        %601 = vmatpush2.xpose.msra.mxu0 0.0
        %602 = vmatprep.subr.mxu0 0.0
        %603 = vmatpush2.xpose.msra.mxu0 0.0
        %604 = vmatprep.subr.mxu0 0.0
        %605 = vmatpush2.xpose.msra.mxu0 0.0
        %606 = vmatprep.subr.mxu0 0.0
        %607 = vmatpush2.xpose.msra.mxu0 0.0
        %608 = vmatprep.subr.mxu0 0.0
        %609 = vmatpush2.xpose.msra.mxu0 0.0
        %610 = vmatprep.subr.mxu0 0.0
        %611 = vmatpush2.xpose.msra.mxu0 0.0
        %612 = vmatprep.subr.mxu0 0.0
        %613 = vmatpush2.xpose.msra.mxu0 0.0
        %614 = vmatprep.subr.mxu0 0.0
        %615 = vmatpush2.xpose.msra.mxu0 0.0
        %616 = vmatprep.subr.mxu0 0.0
        %617 = vmatpush2.xpose.msra.mxu0 0.0
        %618 = vmatprep.mubr.f32.mxu0 0.0
        %619 = vmatmul.mubr.f32.gmra.mxu0 %v549
        %v620 = vpop.f32.mrf.mxu0
        %v621 = vadd.f32 0.0, %v620
        %v622 = vpop.f32.mrf.mxu0
        %623 = vdwg.mxu0
        %v625 = vsel %vm395, %v386, 0
        %v628 = vsel %vm395, %v390, 0
        %630 = vmatprep.subr.mxu0 0.0
        %631 = vmatpush1.xpose.msra.mxu0 0.0
        %632 = vmatprep.subr.mxu0 0.0
        %633 = vmatpush1.xpose.msra.mxu0 0.0
        %634 = vmatprep.subr.mxu0 0.0
        %635 = vmatpush1.xpose.msra.mxu0 0.0
        %636 = vmatprep.subr.mxu0 0.0
        %637 = vmatpush1.xpose.msra.mxu0 0.0
        %638 = vmatprep.subr.mxu0 0.0
        %639 = vmatpush1.xpose.msra.mxu0 0.0
        %640 = vmatprep.subr.mxu0 0.0
        %641 = vmatpush1.xpose.msra.mxu0 0.0
        %642 = vmatprep.subr.mxu0 0.0
        %643 = vmatpush1.xpose.msra.mxu0 0.0
        %644 = vmatprep.subr.mxu0 0.0
        %645 = vmatpush1.xpose.msra.mxu0 0.0
        %646 = vmatprep.subr.mxu0 0.0
        %647 = vmatpush1.xpose.msra.mxu0 0.0
        %648 = vmatprep.subr.mxu0 0.0
        %649 = vmatpush1.xpose.msra.mxu0 0.0
        %650 = vmatprep.subr.mxu0 0.0
        %651 = vmatpush1.xpose.msra.mxu0 0.0
        %652 = vmatprep.subr.mxu0 0.0
        %653 = vmatpush1.xpose.msra.mxu0 0.0
        %654 = vmatprep.subr.mxu0 0.0
        %655 = vmatpush1.xpose.msra.mxu0 0.0
        %656 = vmatprep.subr.mxu0 0.0
        %657 = vmatpush1.xpose.msra.mxu0 0.0
        %658 = vmatprep.subr.mxu0 0.0
        %659 = vmatpush1.xpose.msra.mxu0 0.0
        %660 = vmatprep.subr.mxu0 0.0
        %661 = vmatpush1.xpose.msra.mxu0 %v628
        %662 = vmatprep.subr.mxu0 0.0
        %663 = vmatpush2.xpose.msra.mxu0 0.0
        %664 = vmatprep.subr.mxu0 0.0
        %665 = vmatpush2.xpose.msra.mxu0 0.0
        %666 = vmatprep.subr.mxu0 0.0
        %667 = vmatpush2.xpose.msra.mxu0 0.0
        %668 = vmatprep.subr.mxu0 0.0
        %669 = vmatpush2.xpose.msra.mxu0 0.0
        %670 = vmatprep.subr.mxu0 0.0
        %671 = vmatpush2.xpose.msra.mxu0 0.0
        %672 = vmatprep.subr.mxu0 0.0
        %673 = vmatpush2.xpose.msra.mxu0 0.0
        %674 = vmatprep.subr.mxu0 0.0
        %675 = vmatpush2.xpose.msra.mxu0 0.0
        %676 = vmatprep.subr.mxu0 0.0
        %677 = vmatpush2.xpose.msra.mxu0 0.0
        %678 = vmatprep.subr.mxu0 0.0
        %679 = vmatpush2.xpose.msra.mxu0 0.0
        %680 = vmatprep.subr.mxu0 0.0
        %681 = vmatpush2.xpose.msra.mxu0 0.0
        %682 = vmatprep.subr.mxu0 0.0
        %683 = vmatpush2.xpose.msra.mxu0 0.0
        %684 = vmatprep.subr.mxu0 0.0
        %685 = vmatpush2.xpose.msra.mxu0 0.0
        %686 = vmatprep.subr.mxu0 0.0
        %687 = vmatpush2.xpose.msra.mxu0 0.0
        %688 = vmatprep.subr.mxu0 0.0
        %689 = vmatpush2.xpose.msra.mxu0 0.0
        %690 = vmatprep.subr.mxu0 0.0
        %691 = vmatpush2.xpose.msra.mxu0 0.0
        %692 = vmatprep.subr.mxu0 0.0
        %693 = vmatpush2.xpose.msra.mxu0 0.0
        %694 = vmatprep.mubr.f32.mxu0 0.0
        %695 = vmatmul.mubr.f32.gmra.mxu0 %v625
        %v696 = vpop.f32.mrf.mxu0
        %v697 = vadd.f32 0.0, %v696
        %v698 = vpop.f32.mrf.mxu0
        %699 = vdwg.mxu0
        %v700 = vld [vmem:[#allocation2] sm:$0xff]
        %v701 = vld [vmem:[#allocation2 + $0x8] sm:$0xff]
        %v702 = vld [vmem:[#allocation2 + $0x10] sm:$0xff]
        %v703 = vld [vmem:[#allocation2 + $0x18] sm:$0xff]
        %vm704 = vcmask 64512
        %v705 = vsel %vm704, %v469, -inf
        %706 = vmax.xlane.f32.xlu0 %v705
        %v707 = vpop.xlane.xlu0 %706
        %v708 = vsel %vm704, %v545, -inf
        %709 = vmax.xlane.f32.xlu0 %v708
        %v710 = vpop.xlane.xlu0 %709
        %v711 = vsel %vm704, %v621, -inf
        %712 = vmax.xlane.f32.xlu0 %v711
        %v713 = vpop.xlane.xlu0 %712
        %v714 = vsel %vm704, %v697, -inf
        %715 = vmax.xlane.f32.xlu0 %v714
        %v716 = vpop.xlane.xlu0 %715
        %v717 = vmax.f32 %v700, %v707
        %v718 = vmax.f32 %v701, %v710
        %v719 = vmax.f32 %v702, %v713
        %v720 = vmax.f32 %v703, %v716
        %v721 = vsub.f32 %v700, %v717
        %v722 = vsub.f32 %v701, %v718
        %v723 = vsub.f32 %v702, %v719
        %v724 = vsub.f32 %v703, %v720
        %v725 = vpow.pop %v721
        %v726 = vpow.pop %v722
        %v727 = vpow.pop %v723
        %v728 = vpow.pop %v724
        %730 = vset.pattern.permute.xlu0 0
        %731 = vperm.xlu0 %730, %v717
        %v732 = vpop.permute.xlu0 %731
        %735 = vset.pattern.permute.xlu0 0
        %736 = vperm.xlu0 %735, %v718
        %v737 = vpop.permute.xlu0 %736
        %740 = vset.pattern.permute.xlu0 0
        %741 = vperm.xlu0 %740, %v719
        %v742 = vpop.permute.xlu0 %741
        %745 = vset.pattern.permute.xlu0 0
        %746 = vperm.xlu0 %745, %v720
        %v747 = vpop.permute.xlu0 %746
        %v749 = vsub.f32 %v469, %v732
        %v750 = vsub.f32 %v545, %v737
        %v751 = vsub.f32 %v621, %v742
        %v752 = vsub.f32 %v697, %v747
        %v753 = vpow.pop %v749
        %v754 = vpow.pop %v750
        %v755 = vpow.pop %v751
        %v756 = vpow.pop %v752
        %v757 = vld [vmem:[#allocation3] sm:$0xff]
        %v758 = vld [vmem:[#allocation3 + $0x8] sm:$0xff]
        %v759 = vld [vmem:[#allocation3 + $0x10] sm:$0xff]
        %v760 = vld [vmem:[#allocation3 + $0x18] sm:$0xff]
        %v761 = vmul.f32 %v725, %v757
        %v762 = vmul.f32 %v726, %v758
        %v763 = vmul.f32 %v727, %v759
        %v764 = vmul.f32 %v728, %v760
        %v765 = vsel %vm704, %v753, 0.0
        %766 = vadd.xlane.f32.xlu0 %v765
        %v767 = vpop.xlane.xlu0 %766
        %v768 = vsel %vm704, %v754, 0.0
        %769 = vadd.xlane.f32.xlu0 %v768
        %v770 = vpop.xlane.xlu0 %769
        %v771 = vsel %vm704, %v755, 0.0
        %772 = vadd.xlane.f32.xlu0 %v771
        %v773 = vpop.xlane.xlu0 %772
        %v774 = vsel %vm704, %v756, 0.0
        %775 = vadd.xlane.f32.xlu0 %v774
        %v776 = vpop.xlane.xlu0 %775
        %v777 = vadd.f32 %v761, %v767
        %v778 = vadd.f32 %v762, %v770
        %v779 = vadd.f32 %v763, %v773
        %v780 = vadd.f32 %v764, %v776
        %vm781 = vcmask 7168
        %782 = vst.msk [vmem:[#allocation3] sm:$0xff] %vm781, %v777
        %783 = vst.msk [vmem:[#allocation3 + $0x8] sm:$0xff] %vm781, %v778
        %784 = vst.msk [vmem:[#allocation3 + $0x10] sm:$0xff] %vm781, %v779
        %785 = vst.msk [vmem:[#allocation3 + $0x18] sm:$0xff] %vm781, %v780
        %v786 = vld [vmem:[#allocation4] sm:$0xff]
        %v787 = vld [vmem:[#allocation4 + $0x8] sm:$0xff]
        %v788 = vld [vmem:[#allocation4 + $0x10] sm:$0xff]
        %v789 = vld [vmem:[#allocation4 + $0x18] sm:$0xff]
        %791 = vset.pattern.permute.xlu0 0
        %792 = vperm.xlu0 %791, %v725
        %v793 = vpop.permute.xlu0 %792
        %796 = vset.pattern.permute.xlu0 0
        %797 = vperm.xlu0 %796, %v726
        %v798 = vpop.permute.xlu0 %797
        %801 = vset.pattern.permute.xlu0 0
        %802 = vperm.xlu0 %801, %v727
        %v803 = vpop.permute.xlu0 %802
        %806 = vset.pattern.permute.xlu0 0
        %807 = vperm.xlu0 %806, %v728
        %v808 = vpop.permute.xlu0 %807
        %v810 = vmul.f32 %v793, %v786
        %v811 = vmul.f32 %v798, %v787
        %v812 = vmul.f32 %v803, %v788
        %v813 = vmul.f32 %v808, %v789
        %v815 = vsel %vm704, %v753, 0
        %817 = vmatprep.subr.mxu0 0.0
        %818 = vmatpush1.msra.mxu0 0.0
        %819 = vmatprep.subr.mxu0 0.0
        %820 = vmatpush1.msra.mxu0 0.0
        %821 = vmatprep.subr.mxu0 0.0
        %822 = vmatpush1.msra.mxu0 0.0
        %823 = vmatprep.subr.mxu0 0.0
        %824 = vmatpush1.msra.mxu0 0.0
        %825 = vmatprep.subr.mxu0 0.0
        %826 = vmatpush1.msra.mxu0 0.0
        %827 = vmatprep.subr.mxu0 0.0
        %828 = vmatpush1.msra.mxu0 0.0
        %829 = vmatprep.subr.mxu0 0.0
        %830 = vmatpush1.msra.mxu0 0.0
        %831 = vmatprep.subr.mxu0 0.0
        %832 = vmatpush1.msra.mxu0 0.0
        %833 = vmatprep.subr.mxu0 0.0
        %834 = vmatpush1.msra.mxu0 0.0
        %835 = vmatprep.subr.mxu0 0.0
        %836 = vmatpush1.msra.mxu0 0.0
        %837 = vmatprep.subr.mxu0 0.0
        %838 = vmatpush1.msra.mxu0 0.0
        %839 = vmatprep.subr.mxu0 0.0
        %840 = vmatpush1.msra.mxu0 0.0
        %841 = vmatprep.subr.mxu0 0.0
        %842 = vmatpush1.msra.mxu0 0.0
        %843 = vmatprep.subr.mxu0 0.0
        %844 = vmatpush1.msra.mxu0 0.0
        %845 = vmatprep.subr.mxu0 0.0
        %846 = vmatpush1.msra.mxu0 0.0
        %847 = vmatprep.subr.mxu0 0.0
        %848 = vmatpush1.msra.mxu0 %v391
        %849 = vmatprep.subr.mxu0 0.0
        %850 = vmatpush2.msra.mxu0 0.0
        %851 = vmatprep.subr.mxu0 0.0
        %852 = vmatpush2.msra.mxu0 0.0
        %853 = vmatprep.subr.mxu0 0.0
        %854 = vmatpush2.msra.mxu0 0.0
        %855 = vmatprep.subr.mxu0 0.0
        %856 = vmatpush2.msra.mxu0 0.0
        %857 = vmatprep.subr.mxu0 0.0
        %858 = vmatpush2.msra.mxu0 0.0
        %859 = vmatprep.subr.mxu0 0.0
        %860 = vmatpush2.msra.mxu0 0.0
        %861 = vmatprep.subr.mxu0 0.0
        %862 = vmatpush2.msra.mxu0 0.0
        %863 = vmatprep.subr.mxu0 0.0
        %864 = vmatpush2.msra.mxu0 0.0
        %865 = vmatprep.subr.mxu0 0.0
        %866 = vmatpush2.msra.mxu0 0.0
        %867 = vmatprep.subr.mxu0 0.0
        %868 = vmatpush2.msra.mxu0 0.0
        %869 = vmatprep.subr.mxu0 0.0
        %870 = vmatpush2.msra.mxu0 0.0
        %871 = vmatprep.subr.mxu0 0.0
        %872 = vmatpush2.msra.mxu0 0.0
        %873 = vmatprep.subr.mxu0 0.0
        %874 = vmatpush2.msra.mxu0 0.0
        %875 = vmatprep.subr.mxu0 0.0
        %876 = vmatpush2.msra.mxu0 0.0
        %877 = vmatprep.subr.mxu0 0.0
        %878 = vmatpush2.msra.mxu0 0.0
        %879 = vmatprep.subr.mxu0 0.0
        %880 = vmatpush2.msra.mxu0 0.0
        %881 = vmatprep.mubr.f32.mxu0 0.0
        %882 = vmatmul.mubr.f32.gmra.mxu0 %v815
        %v883 = vpop.f32.mrf.mxu0
        %v884 = vadd.f32 0.0, %v883
        %v885 = vpop.f32.mrf.mxu0
        %886 = vdwg.mxu0
        %v888 = vsel %vm704, %v754, 0
        %890 = vmatprep.subr.mxu0 0.0
        %891 = vmatpush1.msra.mxu0 0.0
        %892 = vmatprep.subr.mxu0 0.0
        %893 = vmatpush1.msra.mxu0 0.0
        %894 = vmatprep.subr.mxu0 0.0
        %895 = vmatpush1.msra.mxu0 0.0
        %896 = vmatprep.subr.mxu0 0.0
        %897 = vmatpush1.msra.mxu0 0.0
        %898 = vmatprep.subr.mxu0 0.0
        %899 = vmatpush1.msra.mxu0 0.0
        %900 = vmatprep.subr.mxu0 0.0
        %901 = vmatpush1.msra.mxu0 0.0
        %902 = vmatprep.subr.mxu0 0.0
        %903 = vmatpush1.msra.mxu0 0.0
        %904 = vmatprep.subr.mxu0 0.0
        %905 = vmatpush1.msra.mxu0 0.0
        %906 = vmatprep.subr.mxu0 0.0
        %907 = vmatpush1.msra.mxu0 0.0
        %908 = vmatprep.subr.mxu0 0.0
        %909 = vmatpush1.msra.mxu0 0.0
        %910 = vmatprep.subr.mxu0 0.0
        %911 = vmatpush1.msra.mxu0 0.0
        %912 = vmatprep.subr.mxu0 0.0
        %913 = vmatpush1.msra.mxu0 0.0
        %914 = vmatprep.subr.mxu0 0.0
        %915 = vmatpush1.msra.mxu0 0.0
        %916 = vmatprep.subr.mxu0 0.0
        %917 = vmatpush1.msra.mxu0 0.0
        %918 = vmatprep.subr.mxu0 0.0
        %919 = vmatpush1.msra.mxu0 0.0
        %920 = vmatprep.subr.mxu0 0.0
        %921 = vmatpush1.msra.mxu0 %v392
        %922 = vmatprep.subr.mxu0 0.0
        %923 = vmatpush2.msra.mxu0 0.0
        %924 = vmatprep.subr.mxu0 0.0
        %925 = vmatpush2.msra.mxu0 0.0
        %926 = vmatprep.subr.mxu0 0.0
        %927 = vmatpush2.msra.mxu0 0.0
        %928 = vmatprep.subr.mxu0 0.0
        %929 = vmatpush2.msra.mxu0 0.0
        %930 = vmatprep.subr.mxu0 0.0
        %931 = vmatpush2.msra.mxu0 0.0
        %932 = vmatprep.subr.mxu0 0.0
        %933 = vmatpush2.msra.mxu0 0.0
        %934 = vmatprep.subr.mxu0 0.0
        %935 = vmatpush2.msra.mxu0 0.0
        %936 = vmatprep.subr.mxu0 0.0
        %937 = vmatpush2.msra.mxu0 0.0
        %938 = vmatprep.subr.mxu0 0.0
        %939 = vmatpush2.msra.mxu0 0.0
        %940 = vmatprep.subr.mxu0 0.0
        %941 = vmatpush2.msra.mxu0 0.0
        %942 = vmatprep.subr.mxu0 0.0
        %943 = vmatpush2.msra.mxu0 0.0
        %944 = vmatprep.subr.mxu0 0.0
        %945 = vmatpush2.msra.mxu0 0.0
        %946 = vmatprep.subr.mxu0 0.0
        %947 = vmatpush2.msra.mxu0 0.0
        %948 = vmatprep.subr.mxu0 0.0
        %949 = vmatpush2.msra.mxu0 0.0
        %950 = vmatprep.subr.mxu0 0.0
        %951 = vmatpush2.msra.mxu0 0.0
        %952 = vmatprep.subr.mxu0 0.0
        %953 = vmatpush2.msra.mxu0 0.0
        %954 = vmatprep.mubr.f32.mxu0 0.0
        %955 = vmatmul.mubr.f32.gmra.mxu0 %v888
        %v956 = vpop.f32.mrf.mxu0
        %v957 = vadd.f32 0.0, %v956
        %v958 = vpop.f32.mrf.mxu0
        %959 = vdwg.mxu0
        %v961 = vsel %vm704, %v755, 0
        %963 = vmatprep.subr.mxu0 0.0
        %964 = vmatpush1.msra.mxu0 0.0
        %965 = vmatprep.subr.mxu0 0.0
        %966 = vmatpush1.msra.mxu0 0.0
        %967 = vmatprep.subr.mxu0 0.0
        %968 = vmatpush1.msra.mxu0 0.0
        %969 = vmatprep.subr.mxu0 0.0
        %970 = vmatpush1.msra.mxu0 0.0
        %971 = vmatprep.subr.mxu0 0.0
        %972 = vmatpush1.msra.mxu0 0.0
        %973 = vmatprep.subr.mxu0 0.0
        %974 = vmatpush1.msra.mxu0 0.0
        %975 = vmatprep.subr.mxu0 0.0
        %976 = vmatpush1.msra.mxu0 0.0
        %977 = vmatprep.subr.mxu0 0.0
        %978 = vmatpush1.msra.mxu0 0.0
        %979 = vmatprep.subr.mxu0 0.0
        %980 = vmatpush1.msra.mxu0 0.0
        %981 = vmatprep.subr.mxu0 0.0
        %982 = vmatpush1.msra.mxu0 0.0
        %983 = vmatprep.subr.mxu0 0.0
        %984 = vmatpush1.msra.mxu0 0.0
        %985 = vmatprep.subr.mxu0 0.0
        %986 = vmatpush1.msra.mxu0 0.0
        %987 = vmatprep.subr.mxu0 0.0
        %988 = vmatpush1.msra.mxu0 0.0
        %989 = vmatprep.subr.mxu0 0.0
        %990 = vmatpush1.msra.mxu0 0.0
        %991 = vmatprep.subr.mxu0 0.0
        %992 = vmatpush1.msra.mxu0 0.0
        %993 = vmatprep.subr.mxu0 0.0
        %994 = vmatpush1.msra.mxu0 %v393
        %995 = vmatprep.subr.mxu0 0.0
        %996 = vmatpush2.msra.mxu0 0.0
        %997 = vmatprep.subr.mxu0 0.0
        %998 = vmatpush2.msra.mxu0 0.0
        %999 = vmatprep.subr.mxu0 0.0
        %1000 = vmatpush2.msra.mxu0 0.0
        %1001 = vmatprep.subr.mxu0 0.0
        %1002 = vmatpush2.msra.mxu0 0.0
        %1003 = vmatprep.subr.mxu0 0.0
        %1004 = vmatpush2.msra.mxu0 0.0
        %1005 = vmatprep.subr.mxu0 0.0
        %1006 = vmatpush2.msra.mxu0 0.0
        %1007 = vmatprep.subr.mxu0 0.0
        %1008 = vmatpush2.msra.mxu0 0.0
        %1009 = vmatprep.subr.mxu0 0.0
        %1010 = vmatpush2.msra.mxu0 0.0
        %1011 = vmatprep.subr.mxu0 0.0
        %1012 = vmatpush2.msra.mxu0 0.0
        %1013 = vmatprep.subr.mxu0 0.0
        %1014 = vmatpush2.msra.mxu0 0.0
        %1015 = vmatprep.subr.mxu0 0.0
        %1016 = vmatpush2.msra.mxu0 0.0
        %1017 = vmatprep.subr.mxu0 0.0
        %1018 = vmatpush2.msra.mxu0 0.0
        %1019 = vmatprep.subr.mxu0 0.0
        %1020 = vmatpush2.msra.mxu0 0.0
        %1021 = vmatprep.subr.mxu0 0.0
        %1022 = vmatpush2.msra.mxu0 0.0
        %1023 = vmatprep.subr.mxu0 0.0
        %1024 = vmatpush2.msra.mxu0 0.0
        %1025 = vmatprep.subr.mxu0 0.0
        %1026 = vmatpush2.msra.mxu0 0.0
        %1027 = vmatprep.mubr.f32.mxu0 0.0
        %1028 = vmatmul.mubr.f32.gmra.mxu0 %v961
        %v1029 = vpop.f32.mrf.mxu0
        %v1030 = vadd.f32 0.0, %v1029
        %v1031 = vpop.f32.mrf.mxu0
        %1032 = vdwg.mxu0
        %v1034 = vsel %vm704, %v756, 0
        %1036 = vmatprep.subr.mxu0 0.0
        %1037 = vmatpush1.msra.mxu0 0.0
        %1038 = vmatprep.subr.mxu0 0.0
        %1039 = vmatpush1.msra.mxu0 0.0
        %1040 = vmatprep.subr.mxu0 0.0
        %1041 = vmatpush1.msra.mxu0 0.0
        %1042 = vmatprep.subr.mxu0 0.0
        %1043 = vmatpush1.msra.mxu0 0.0
        %1044 = vmatprep.subr.mxu0 0.0
        %1045 = vmatpush1.msra.mxu0 0.0
        %1046 = vmatprep.subr.mxu0 0.0
        %1047 = vmatpush1.msra.mxu0 0.0
        %1048 = vmatprep.subr.mxu0 0.0
        %1049 = vmatpush1.msra.mxu0 0.0
        %1050 = vmatprep.subr.mxu0 0.0
        %1051 = vmatpush1.msra.mxu0 0.0
        %1052 = vmatprep.subr.mxu0 0.0
        %1053 = vmatpush1.msra.mxu0 0.0
        %1054 = vmatprep.subr.mxu0 0.0
        %1055 = vmatpush1.msra.mxu0 0.0
        %1056 = vmatprep.subr.mxu0 0.0
        %1057 = vmatpush1.msra.mxu0 0.0
        %1058 = vmatprep.subr.mxu0 0.0
        %1059 = vmatpush1.msra.mxu0 0.0
        %1060 = vmatprep.subr.mxu0 0.0
        %1061 = vmatpush1.msra.mxu0 0.0
        %1062 = vmatprep.subr.mxu0 0.0
        %1063 = vmatpush1.msra.mxu0 0.0
        %1064 = vmatprep.subr.mxu0 0.0
        %1065 = vmatpush1.msra.mxu0 0.0
        %1066 = vmatprep.subr.mxu0 0.0
        %1067 = vmatpush1.msra.mxu0 %v394
        %1068 = vmatprep.subr.mxu0 0.0
        %1069 = vmatpush2.msra.mxu0 0.0
        %1070 = vmatprep.subr.mxu0 0.0
        %1071 = vmatpush2.msra.mxu0 0.0
        %1072 = vmatprep.subr.mxu0 0.0
        %1073 = vmatpush2.msra.mxu0 0.0
        %1074 = vmatprep.subr.mxu0 0.0
        %1075 = vmatpush2.msra.mxu0 0.0
        %1076 = vmatprep.subr.mxu0 0.0
        %1077 = vmatpush2.msra.mxu0 0.0
        %1078 = vmatprep.subr.mxu0 0.0
        %1079 = vmatpush2.msra.mxu0 0.0
        %1080 = vmatprep.subr.mxu0 0.0
        %1081 = vmatpush2.msra.mxu0 0.0
        %1082 = vmatprep.subr.mxu0 0.0
        %1083 = vmatpush2.msra.mxu0 0.0
        %1084 = vmatprep.subr.mxu0 0.0
        %1085 = vmatpush2.msra.mxu0 0.0
        %1086 = vmatprep.subr.mxu0 0.0
        %1087 = vmatpush2.msra.mxu0 0.0
        %1088 = vmatprep.subr.mxu0 0.0
        %1089 = vmatpush2.msra.mxu0 0.0
        %1090 = vmatprep.subr.mxu0 0.0
        %1091 = vmatpush2.msra.mxu0 0.0
        %1092 = vmatprep.subr.mxu0 0.0
        %1093 = vmatpush2.msra.mxu0 0.0
        %1094 = vmatprep.subr.mxu0 0.0
        %1095 = vmatpush2.msra.mxu0 0.0
        %1096 = vmatprep.subr.mxu0 0.0
        %1097 = vmatpush2.msra.mxu0 0.0
        %1098 = vmatprep.subr.mxu0 0.0
        %1099 = vmatpush2.msra.mxu0 0.0
        %1100 = vmatprep.mubr.f32.mxu0 0.0
        %1101 = vmatmul.mubr.f32.gmra.mxu0 %v1034
        %v1102 = vpop.f32.mrf.mxu0
        %v1103 = vadd.f32 0.0, %v1102
        %v1104 = vpop.f32.mrf.mxu0
        %1105 = vdwg.mxu0
        %v1106 = vadd.f32 %v810, %v884
        %v1107 = vadd.f32 %v811, %v957
        %v1108 = vadd.f32 %v812, %v1030
        %v1109 = vadd.f32 %v813, %v1103
        %1110 = vst.msk [vmem:[#allocation4] sm:$0xff] %vm395, %v1106
        %1111 = vst.msk [vmem:[#allocation4 + $0x8] sm:$0xff] %vm395, %v1107
        %1112 = vst.msk [vmem:[#allocation4 + $0x10] sm:$0xff] %vm395, %v1108
        %1113 = vst.msk [vmem:[#allocation4 + $0x18] sm:$0xff] %vm395, %v1109
        %1114 = vst.msk [vmem:[#allocation2] sm:$0xff] %vm781, %v717
        %1115 = vst.msk [vmem:[#allocation2 + $0x8] sm:$0xff] %vm781, %v718
        %1116 = vst.msk [vmem:[#allocation2 + $0x10] sm:$0xff] %vm781, %v719
        %1117 = vst.msk [vmem:[#allocation2 + $0x18] sm:$0xff] %vm781, %v720
        // Predicated region
        $region61: #{tpu_custom_call.1} parent=39 // pred_check
          %p1118 = pneg %p365
        $region62: #{tpu_custom_call.1} parent=39 // pred_check_branch
          %1120 = sbr.rel (%p1118) target = $region64
        $region63: #{tpu_custom_call.1} parent=39 // pred_region
          %v1121 = vld [vmem:[#allocation3] sm:$0xff]
          %v1122 = vld [vmem:[#allocation3 + $0x8] sm:$0xff]
          %v1123 = vld [vmem:[#allocation3 + $0x10] sm:$0xff]
          %v1124 = vld [vmem:[#allocation3 + $0x18] sm:$0xff]
          %v1125 = vrcp.pop %v1121
          %v1126 = vrcp.pop %v1122
          %v1127 = vrcp.pop %v1123
          %v1128 = vrcp.pop %v1124
          %v1129 = vld [vmem:[#allocation4] sm:$0xff]
          %v1130 = vld [vmem:[#allocation4 + $0x8] sm:$0xff]
          %v1131 = vld [vmem:[#allocation4 + $0x10] sm:$0xff]
          %v1132 = vld [vmem:[#allocation4 + $0x18] sm:$0xff]
          %1134 = vset.pattern.permute.xlu0 0
          %1135 = vperm.xlu0 %1134, %v1125
          %v1136 = vpop.permute.xlu0 %1135
          %1139 = vset.pattern.permute.xlu0 0
          %1140 = vperm.xlu0 %1139, %v1126
          %v1141 = vpop.permute.xlu0 %1140
          %1144 = vset.pattern.permute.xlu0 0
          %1145 = vperm.xlu0 %1144, %v1127
          %v1146 = vpop.permute.xlu0 %1145
          %1149 = vset.pattern.permute.xlu0 0
          %1150 = vperm.xlu0 %1149, %v1128
          %v1151 = vpop.permute.xlu0 %1150
          %v1153 = vmul.f32 %v1129, %v1136
          %v1154 = vmul.f32 %v1130, %v1141
          %v1155 = vmul.f32 %v1131, %v1146
          %v1156 = vmul.f32 %v1132, %v1151
          %1158 = vrot.lane.b32.xlu0 %v1154, 16
          %v1159 = vpop.permute.xlu0 %1158
          %1162 = vrot.lane.b32.xlu0 %v1155, 32
          %v1163 = vpop.permute.xlu0 %1162
          %1166 = vrot.lane.b32.xlu0 %v1156, 48
          %v1167 = vpop.permute.xlu0 %1166
          %v1169 = vsel %vm395, %v1153, %v1159
          %vm1170 = vcmask 261120
          %v1171 = vsel %vm1170, %v1169, %v1163
          %vm1172 = vcmask 392192
          %v1173 = vsel %vm1172, %v1171, %v1167
          %v1174 = vld [vmem:[#allocation11] sm:$0xff]
          %v1175 = vld [vmem:[#allocation11 + $0x8] sm:$0xff]
          %v1176 = vld [vmem:[#allocation11 + $0x10] sm:$0xff]
          %v1177 = vld [vmem:[#allocation11 + $0x18] sm:$0xff]
          %v1178 = vld [vmem:[#allocation11 + $0x20] sm:$0xff]
          %v1179 = vld [vmem:[#allocation11 + $0x28] sm:$0xff]
          %v1180 = vld [vmem:[#allocation11 + $0x30] sm:$0xff]
          %v1181 = vld [vmem:[#allocation11 + $0x38] sm:$0xff]
          %v1182 = vld [vmem:[%s4] sm:$0x1]
          %v1184 = vlaneseq
          %v1185 = vshrl.u32 %v1184, 7
          %v1186 = vsub.s32 0, %v1185
          %v1187 = vrot.slane %v1182, %v1186
          %vm1189 = vcmask 523264
          %v1191 = vsel %vm1189, %v1173, 0
          %1193 = vmatprep.subr.mxu0 0.0
          %1194 = vmatpush1.msra.mxu0 0.0
          %1195 = vmatprep.subr.mxu0 0.0
          %1196 = vmatpush1.msra.mxu0 0.0
          %1197 = vmatprep.subr.mxu0 0.0
          %1198 = vmatpush1.msra.mxu0 0.0
          %1199 = vmatprep.subr.mxu0 0.0
          %1200 = vmatpush1.msra.mxu0 0.0
          %1201 = vmatprep.subr.mxu0 0.0
          %1202 = vmatpush1.msra.mxu0 0.0
          %1203 = vmatprep.subr.mxu0 0.0
          %1204 = vmatpush1.msra.mxu0 0.0
          %1205 = vmatprep.subr.mxu0 0.0
          %1206 = vmatpush1.msra.mxu0 0.0
          %1207 = vmatprep.subr.mxu0 0.0
          %1208 = vmatpush1.msra.mxu0 0.0
          %1209 = vmatprep.subr.mxu0 0.0
          %1210 = vmatpush1.msra.mxu0 %v1181
          %1211 = vmatprep.subr.mxu0 0.0
          %1212 = vmatpush1.msra.mxu0 %v1180
          %1213 = vmatprep.subr.mxu0 0.0
          %1214 = vmatpush1.msra.mxu0 %v1179
          %1215 = vmatprep.subr.mxu0 0.0
          %1216 = vmatpush1.msra.mxu0 %v1178
          %1217 = vmatprep.subr.mxu0 0.0
          %1218 = vmatpush1.msra.mxu0 %v1177
          %1219 = vmatprep.subr.mxu0 0.0
          %1220 = vmatpush1.msra.mxu0 %v1176
          %1221 = vmatprep.subr.mxu0 0.0
          %1222 = vmatpush1.msra.mxu0 %v1175
          %1223 = vmatprep.subr.mxu0 0.0
          %1224 = vmatpush1.msra.mxu0 %v1174
          %1225 = vmatprep.subr.mxu0 0.0
          %1226 = vmatpush2.msra.mxu0 0.0
          %1227 = vmatprep.subr.mxu0 0.0
          %1228 = vmatpush2.msra.mxu0 0.0
          %1229 = vmatprep.subr.mxu0 0.0
          %1230 = vmatpush2.msra.mxu0 0.0
          %1231 = vmatprep.subr.mxu0 0.0
          %1232 = vmatpush2.msra.mxu0 0.0
          %1233 = vmatprep.subr.mxu0 0.0
          %1234 = vmatpush2.msra.mxu0 0.0
          %1235 = vmatprep.subr.mxu0 0.0
          %1236 = vmatpush2.msra.mxu0 0.0
          %1237 = vmatprep.subr.mxu0 0.0
          %1238 = vmatpush2.msra.mxu0 0.0
          %1239 = vmatprep.subr.mxu0 0.0
          %1240 = vmatpush2.msra.mxu0 0.0
          %1241 = vmatprep.subr.mxu0 0.0
          %1242 = vmatpush2.msra.mxu0 0.0
          %1243 = vmatprep.subr.mxu0 0.0
          %1244 = vmatpush2.msra.mxu0 0.0
          %1245 = vmatprep.subr.mxu0 0.0
          %1246 = vmatpush2.msra.mxu0 0.0
          %1247 = vmatprep.subr.mxu0 0.0
          %1248 = vmatpush2.msra.mxu0 0.0
          %1249 = vmatprep.subr.mxu0 0.0
          %1250 = vmatpush2.msra.mxu0 0.0
          %1251 = vmatprep.subr.mxu0 0.0
          %1252 = vmatpush2.msra.mxu0 0.0
          %1253 = vmatprep.subr.mxu0 0.0
          %1254 = vmatpush2.msra.mxu0 0.0
          %1255 = vmatprep.subr.mxu0 0.0
          %1256 = vmatpush2.msra.mxu0 0.0
          %1257 = vmatprep.mubr.f32.mxu0 0.0
          %1258 = vmatmul.mubr.f32.gmra.mxu0 %v1191
          %v1259 = vpop.f32.mrf.mxu0
          %v1260 = vadd.f32 %v1187, %v1259
          %v1261 = vpop.f32.mrf.mxu0
          %1262 = vdwg.mxu0
          %1263 = vst.msk [vmem:[%s364] sm:$0xff] %vm1189, %v1260
        $region64: #{tpu_custom_call.1} parent=39 // pred_fallthru
          _
        %s1264 = sand.u32 %s181, 1
        %s1265 = scalar_lea.sflag [#allocation7], %s1264
        %s1266 = sand.u32 %s181, 1
        %s1267 = smul.addr %s1266, 8
        %s1268 = scalar_lea.vmem [#allocation13], %s1267
        // Predicated region
        $region65: #{tpu_custom_call.1} parent=39 // pred_check
          %p1269 = pneg %p191
        $region66: #{tpu_custom_call.1} parent=39 // pred_check_branch
          %1271 = sbr.rel (%p1269) target = $region68
        $region67: #{tpu_custom_call.1} parent=39 // pred_region
          %s1273 = ssub.s32 128, 128
          %1274 = vsyncadd %s1265, %s1273
          %s1275 = sadd.s32 %s32, %s31
          %s1276 = smul.addr %s1275, 128
          %s1277 = scalar_lea.hbm %s5, %s1276
          %s1279 = sshll.u32 %s1268, 4
          %s1280 = int_to_ptr.vmem [resolvable:$true] %s1279
          %1282 = dma.vmem_to_hbm [thread:$0]  %s1280, 128, %s1277, %s1265
        $region68: #{tpu_custom_call.1} parent=39 // pred_fallthru
          _
      $region40: #{tpu_custom_call.1} parent=5 // pred_fallthru
        _
      %p1283 = scmp.le.s32.totalorder 2, %s21
      // Predicated region
      $region69: #{tpu_custom_call.1} parent=5 // pred_check
        %p1284 = pneg %p1283
      $region70: #{tpu_custom_call.1} parent=5 // pred_check_branch
        %1286 = sbr.rel (%p1284) target = $region72
      $region71: #{tpu_custom_call.1} parent=5 // pred_region
        %s1287 = ssub.s32 %s21, 2
        // Predicated region
        $region73: #{tpu_custom_call.1} parent=71 // pred_check
          %p1288 = pneg %p197
        $region74: #{tpu_custom_call.1} parent=71 // pred_check_branch
          %1290 = sbr.rel (%p1288) target = $region76
        $region75: #{tpu_custom_call.1} parent=71 // pred_region
          %s1291 = sand.u32 %s182, 1
          %s1292 = scalar_lea.sflag [#allocation7], %s1291
          %s1293 = sand.u32 %s182, 1
          %s1294 = smul.addr %s1293, 8
          %s1295 = scalar_lea.vmem [#allocation13], %s1294
          %1296 = dma.done %s1292, 128
        $region76: #{tpu_custom_call.1} parent=71 // pred_fallthru
          _
      $region72: #{tpu_custom_call.1} parent=5 // pred_fallthru
        _
    $region6: #{tpu_custom_call.1} parent=1 // loop_footer
      %s25 = sadd.s32 1, %s21
    $region7: #{tpu_custom_call.1} parent=1 // loop_footer_branch
      %20 = sbr.rel target = $region3
    $region8: #{tpu_custom_call.1} parent=1 // loop_exit
      _
    %1297 = vsyncpa [#allocation6], 1
    %s1298 = scalar_lea.sflag [#allocation6], 1
    %1299 = vsyncpa %s1298, 1
    %1300 = vsyncpa [#allocation9], 1
    %s1301 = scalar_lea.sflag [#allocation9], 1
    %1302 = vsyncpa %s1301, 1
    %1303 = vsyncpa [#allocation12], 1
    %1304 = vsyncpa [#allocation7], 1
    %s1305 = scalar_lea.sflag [#allocation7], 1
    %1306 = vsyncpa %s1305, 1

</llo_original>
